<compile_context>
chip_gen: v7x
topology: tpu7x:2x2x1
jax: 0.10.0
libtpu: 0.0.40
codegen_flags: <defaults>
</compile_context>

<pallas_src>
import jax
import jax.numpy as jnp
from jax.experimental import pallas as pl
from jax.experimental.pallas import tpu as pltpu


# ---------------------------------------------------------------------------
# Fused Pallas kernel
# ---------------------------------------------------------------------------

def make_stock_model_kernel(num_layers, B, T, H):
    n_in = 1 + 3 * num_layers + 4     # x + per-layer (wihT, whhT, b) + head params

    def kernel(*refs):
        x_ref = refs[0]                                   # (B*T, Din), row = b*T + t
        layer_refs = refs[1:1 + 3 * num_layers]
        w1_ref, b1_ref, w2_ref, b2_ref = refs[1 + 3 * num_layers:n_in]
        out_ref = refs[n_in]                              # (B, O)
        seq_sc = refs[n_in + 1]                           # (T*B, H) VMEM, row = t*B + b

        G = 4 * H
        h_last = None

        for layer in range(num_layers):
            wihT = layer_refs[3 * layer][...]             # (Din_l, 4H)
            whhT = layer_refs[3 * layer + 1][...]         # (H, 4H)
            bias = layer_refs[3 * layer + 2][...]         # (1, 4H)

            # Hoisted input projection: one MXU pass over all B*T steps,
            # off the sequential critical path.
            if layer == 0:
                gx = jnp.dot(x_ref[...], wihT,
                             preferred_element_type=jnp.float32) + bias
                gx = gx.reshape(B, T, G)                  # batch-major rows
                gx_steps = [gx[:, t, :] for t in range(T)]          # (B, 4H) each
            else:
                gx = jnp.dot(seq_sc[...], wihT,
                             preferred_element_type=jnp.float32) + bias
                gx_steps = [gx[t * B:(t + 1) * B, :] for t in range(T)]

            keep_seq = layer + 1 < num_layers
            h = jnp.zeros((B, H), jnp.float32)            # fresh zero h/c per layer
            c = jnp.zeros((B, H), jnp.float32)

            for t in range(T):                            # static unroll (T small)
                gates = gx_steps[t] + jnp.dot(
                    h, whhT, preferred_element_type=jnp.float32)     # (B, 4H)
                sig = jax.nn.sigmoid(gates)               # full-vreg EUP pass
                th = jnp.tanh(gates)                      # full-vreg EUP pass
                i_g = sig[:, 0 * H:1 * H]
                f_g = sig[:, 1 * H:2 * H]
                g_g = th[:, 2 * H:3 * H]
                o_g = sig[:, 3 * H:4 * H]
                c = f_g * c + i_g * g_g
                h = o_g * jnp.tanh(c)
                if keep_seq:                              # last layer: no seq stores
                    seq_sc[t * B:(t + 1) * B, :] = h      # stays in VMEM
            h_last = h

        # Head: fc1 -> ReLU -> fc2 on output[:, -1, :]
        y = jnp.dot(h_last, w1_ref[...],
                    preferred_element_type=jnp.float32) + b1_ref[...]
        y = jnp.maximum(y, 0.0)
        out_ref[...] = (jnp.dot(y, w2_ref[...],
                                preferred_element_type=jnp.float32) + b2_ref[...])

    return kernel


# ---------------------------------------------------------------------------
# Wrapper
# ---------------------------------------------------------------------------

_VMEM_SPEC = pl.BlockSpec(memory_space=pltpu.MemorySpace.VMEM)


@jax.jit
def stock_model_forward(x, lstm_params, w1T, b1, w2T, b2):
    """x: (B, T, input_size) batch_first, matching PyTorch semantics."""
    B, T, Din = x.shape
    H = w1T.shape[0]
    O = w2T.shape[1]
    L = len(lstm_params)

    flat = []
    for (wihT, whhT, bias) in lstm_params:
        flat += [wihT, whhT, bias]
    flat += [w1T, b1, w2T, b2]

    # Free row-major reshape (no transpose, no data movement): row = b*T + t.
    x2 = x.astype(jnp.float32).reshape(B * T, Din)

    return pl.pallas_call(
        make_stock_model_kernel(L, B, T, H),
        out_shape=jax.ShapeDtypeStruct((B, O), jnp.float32),
        in_specs=[_VMEM_SPEC] * (1 + len(flat)),
        out_specs=_VMEM_SPEC,
        scratch_shapes=[pltpu.VMEM((T * B, H), jnp.float32)],
    )(x2, *flat)


# ---------------------------------------------------------------------------
# Parameter construction (deterministic, PyTorch-style uniform init)
# ---------------------------------------------------------------------------

def init_params(key, input_size, hidden_size, num_layers, output_size):
    H = hidden_size
    bound = 1.0 / jnp.sqrt(jnp.float32(H))

    def uni(k, shape):
        return jax.random.uniform(k, shape, jnp.float32, -bound, bound)

    keys = jax.random.split(key, num_layers * 4 + 4)
    ki = 0
    lstm_params = []
    for layer in range(num_layers):
        din = input_size if layer == 0 else H
        w_ih = uni(keys[ki], (4 * H, din)); ki += 1
        w_hh = uni(keys[ki], (4 * H, H)); ki += 1
        b_ih = uni(keys[ki], (4 * H,)); ki += 1
        b_hh = uni(keys[ki], (4 * H,)); ki += 1
        lstm_params.append((w_ih.T, w_hh.T, (b_ih + b_hh).reshape(1, 4 * H)))
    w1 = uni(keys[ki], (H, H)); ki += 1
    b1 = uni(keys[ki], (H,)); ki += 1
    w2 = uni(keys[ki], (output_size, H)); ki += 1
    b2 = uni(keys[ki], (output_size,)); ki += 1
    return (tuple(lstm_params), w1.T, b1.reshape(1, H),
            w2.T, b2.reshape(1, output_size))


# ---------------------------------------------------------------------------
# Pure-JAX reference (correctness spot-check)
# ---------------------------------------------------------------------------

def reference_forward(x, lstm_params, w1T, b1, w2T, b2):
    B, T, _ = x.shape
    seq = x.astype(jnp.float32)
    for (wihT, whhT, b) in lstm_params:
        H = whhT.shape[0]
        h = jnp.zeros((B, H), jnp.float32)
        c = jnp.zeros((B, H), jnp.float32)
        outs = []
        for t in range(T):
            gates = seq[:, t, :] @ wihT + h @ whhT + b
            i_g = jax.nn.sigmoid(gates[:, 0 * H:1 * H])
            f_g = jax.nn.sigmoid(gates[:, 1 * H:2 * H])
            g_g = jnp.tanh(gates[:, 2 * H:3 * H])
            o_g = jax.nn.sigmoid(gates[:, 3 * H:4 * H])
            c = f_g * c + i_g * g_g
            h = o_g * jnp.tanh(c)
            outs.append(h)
        seq = jnp.stack(outs, axis=1)
    last = seq[:, -1, :]
    y = jnp.maximum(last @ w1T + b1, 0.0)
    return y @ w2T + b2


# ---------------------------------------------------------------------------
# Main
# ---------------------------------------------------------------------------

if __name__ == "__main__":
    config = {
        "model": {
            "input_size": 4,
            "hidden_size": 32,
            "num_layers": 2,
            "output_size": 1,
        }
    }
    B, T = 2, 8
    I = config["model"]["input_size"]
    H = config["model"]["hidden_size"]
    L = config["model"]["num_layers"]
    O = config["model"]["output_size"]

    key = jax.random.PRNGKey(0)
    k_x, k_p = jax.random.split(key)
    x = jax.random.normal(k_x, (B, T, I), jnp.float32)

    lstm_params, w1T, b1, w2T, b2 = init_params(k_p, I, H, L, O)

    out = stock_model_forward(x, lstm_params, w1T, b1, w2T, b2)
    out = jax.block_until_ready(out)

    ref = reference_forward(x, lstm_params, w1T, b1, w2T, b2)
    assert out.shape == (B, O), out.shape
    assert jnp.allclose(out, ref, atol=1e-4, rtol=1e-4), (out, ref)

    print("KERNEL_OK")
</pallas_src>

<mosaic_0001>
module attributes {stable_mosaic.version = 11 : i64} {
  func.func @kernel(%arg0: memref<16x4xf32, #tpu.memory_space<vmem>>, %arg1: memref<4x128xf32, #tpu.memory_space<vmem>>, %arg2: memref<32x128xf32, #tpu.memory_space<vmem>>, %arg3: memref<1x128xf32, #tpu.memory_space<vmem>>, %arg4: memref<32x128xf32, #tpu.memory_space<vmem>>, %arg5: memref<32x128xf32, #tpu.memory_space<vmem>>, %arg6: memref<1x128xf32, #tpu.memory_space<vmem>>, %arg7: memref<32x32xf32, #tpu.memory_space<vmem>>, %arg8: memref<1x32xf32, #tpu.memory_space<vmem>>, %arg9: memref<32x1xf32, #tpu.memory_space<vmem>>, %arg10: memref<1x1xf32, #tpu.memory_space<vmem>>, %arg11: memref<2x1xf32, #tpu.memory_space<vmem>>, %arg12: memref<16x32xf32, #tpu.memory_space<vmem>>) attributes {dimension_semantics = [], scalar_prefetch = 0 : i64, scratch_operands = 1 : i64, tpu.core_type = #tpu.core_type<tc>} {
    %c0 = arith.constant 0 : index
    %c0_0 = arith.constant 0 : index
    %0 = vector.load %arg1[%c0, %c0_0] : memref<4x128xf32, #tpu.memory_space<vmem>>, vector<4x128xf32>
    %c0_1 = arith.constant 0 : index
    %c0_2 = arith.constant 0 : index
    %1 = vector.load %arg2[%c0_1, %c0_2] : memref<32x128xf32, #tpu.memory_space<vmem>>, vector<32x128xf32>
    %c0_3 = arith.constant 0 : index
    %c0_4 = arith.constant 0 : index
    %2 = vector.load %arg3[%c0_3, %c0_4] : memref<1x128xf32, #tpu.memory_space<vmem>>, vector<1x128xf32>
    %c0_5 = arith.constant 0 : index
    %c0_6 = arith.constant 0 : index
    %3 = vector.load %arg0[%c0_5, %c0_6] : memref<16x4xf32, #tpu.memory_space<vmem>>, vector<16x4xf32>
    %cst = arith.constant dense<0.000000e+00> : vector<16x128xf32>
    %4 = tpu.matmul %3, %0, %cst {dimension_numbers = #tpu.dot_dimension_numbers<[1], [0], [0], [1], [0, 0, 1, 1], [], []>} : vector<16x4xf32>, vector<4x128xf32>, vector<16x128xf32> -> vector<16x128xf32>
    %5 = vector.broadcast %2 : vector<1x128xf32> to vector<16x128xf32>
    %6 = arith.addf %4, %5 : vector<16x128xf32>
    %7 = vector.shape_cast %6 : vector<16x128xf32> to vector<2x8x128xf32>
    %8 = vector.extract_strided_slice %7 {offsets = [0, 0, 0], sizes = [2, 1, 128], strides = [1, 1, 1]} : vector<2x8x128xf32> to vector<2x1x128xf32>
    %9 = vector.shape_cast %8 : vector<2x1x128xf32> to vector<2x128xf32>
    %10 = vector.extract_strided_slice %7 {offsets = [0, 1, 0], sizes = [2, 1, 128], strides = [1, 1, 1]} : vector<2x8x128xf32> to vector<2x1x128xf32>
    %11 = vector.shape_cast %10 : vector<2x1x128xf32> to vector<2x128xf32>
    %12 = vector.extract_strided_slice %7 {offsets = [0, 2, 0], sizes = [2, 1, 128], strides = [1, 1, 1]} : vector<2x8x128xf32> to vector<2x1x128xf32>
    %13 = vector.shape_cast %12 : vector<2x1x128xf32> to vector<2x128xf32>
    %14 = vector.extract_strided_slice %7 {offsets = [0, 3, 0], sizes = [2, 1, 128], strides = [1, 1, 1]} : vector<2x8x128xf32> to vector<2x1x128xf32>
    %15 = vector.shape_cast %14 : vector<2x1x128xf32> to vector<2x128xf32>
    %16 = vector.extract_strided_slice %7 {offsets = [0, 4, 0], sizes = [2, 1, 128], strides = [1, 1, 1]} : vector<2x8x128xf32> to vector<2x1x128xf32>
    %17 = vector.shape_cast %16 : vector<2x1x128xf32> to vector<2x128xf32>
    %18 = vector.extract_strided_slice %7 {offsets = [0, 5, 0], sizes = [2, 1, 128], strides = [1, 1, 1]} : vector<2x8x128xf32> to vector<2x1x128xf32>
    %19 = vector.shape_cast %18 : vector<2x1x128xf32> to vector<2x128xf32>
    %20 = vector.extract_strided_slice %7 {offsets = [0, 6, 0], sizes = [2, 1, 128], strides = [1, 1, 1]} : vector<2x8x128xf32> to vector<2x1x128xf32>
    %21 = vector.shape_cast %20 : vector<2x1x128xf32> to vector<2x128xf32>
    %22 = vector.extract_strided_slice %7 {offsets = [0, 7, 0], sizes = [2, 1, 128], strides = [1, 1, 1]} : vector<2x8x128xf32> to vector<2x1x128xf32>
    %23 = vector.shape_cast %22 : vector<2x1x128xf32> to vector<2x128xf32>
    %cst_7 = arith.constant 0.000000e+00 : f32
    %24 = vector.broadcast %cst_7 : f32 to vector<2x32xf32>
    %cst_8 = arith.constant 0.000000e+00 : f32
    %25 = vector.broadcast %cst_8 : f32 to vector<2x32xf32>
    %cst_9 = arith.constant dense<0.000000e+00> : vector<2x128xf32>
    %26 = tpu.matmul %24, %1, %cst_9 {dimension_numbers = #tpu.dot_dimension_numbers<[1], [0], [0], [1], [0, 0, 1, 1], [], []>} : vector<2x32xf32>, vector<32x128xf32>, vector<2x128xf32> -> vector<2x128xf32>
    %27 = arith.addf %9, %26 : vector<2x128xf32>
    %28 = arith.negf %27 : vector<2x128xf32>
    %29 = math.exp %28 : vector<2x128xf32>
    %cst_10 = arith.constant 1.000000e+00 : f32
    %30 = vector.broadcast %cst_10 : f32 to vector<2x128xf32>
    %31 = arith.addf %30, %29 : vector<2x128xf32>
    %32 = arith.divf %30, %31 : vector<2x128xf32>
    %33 = math.tanh %27 : vector<2x128xf32>
    %34 = vector.extract_strided_slice %32 {offsets = [0, 0], sizes = [2, 32], strides = [1, 1]} : vector<2x128xf32> to vector<2x32xf32>
    %35 = vector.extract_strided_slice %32 {offsets = [0, 32], sizes = [2, 32], strides = [1, 1]} : vector<2x128xf32> to vector<2x32xf32>
    %36 = vector.extract_strided_slice %33 {offsets = [0, 64], sizes = [2, 32], strides = [1, 1]} : vector<2x128xf32> to vector<2x32xf32>
    %37 = vector.extract_strided_slice %32 {offsets = [0, 96], sizes = [2, 32], strides = [1, 1]} : vector<2x128xf32> to vector<2x32xf32>
    %38 = arith.mulf %35, %25 : vector<2x32xf32>
    %39 = arith.mulf %34, %36 : vector<2x32xf32>
    %40 = arith.addf %38, %39 : vector<2x32xf32>
    %41 = math.tanh %40 : vector<2x32xf32>
    %42 = arith.mulf %37, %41 : vector<2x32xf32>
    %c0_11 = arith.constant 0 : index
    %c0_12 = arith.constant 0 : index
    %43 = vector.load %arg12[%c0_11, %c0_12] : memref<16x32xf32, #tpu.memory_space<vmem>>, vector<2x32xf32>
    tpu.vector_store %arg12[%c0_11, %c0_12], %42 {strides = array<i32>} : memref<16x32xf32, #tpu.memory_space<vmem>>, vector<2x32xf32>,
    %cst_13 = arith.constant dense<0.000000e+00> : vector<2x128xf32>
    %44 = tpu.matmul %42, %1, %cst_13 {dimension_numbers = #tpu.dot_dimension_numbers<[1], [0], [0], [1], [0, 0, 1, 1], [], []>} : vector<2x32xf32>, vector<32x128xf32>, vector<2x128xf32> -> vector<2x128xf32>
    %45 = arith.addf %11, %44 : vector<2x128xf32>
    %46 = arith.negf %45 : vector<2x128xf32>
    %47 = math.exp %46 : vector<2x128xf32>
    %cst_14 = arith.constant 1.000000e+00 : f32
    %48 = vector.broadcast %cst_14 : f32 to vector<2x128xf32>
    %49 = arith.addf %48, %47 : vector<2x128xf32>
    %50 = arith.divf %48, %49 : vector<2x128xf32>
    %51 = math.tanh %45 : vector<2x128xf32>
    %52 = vector.extract_strided_slice %50 {offsets = [0, 0], sizes = [2, 32], strides = [1, 1]} : vector<2x128xf32> to vector<2x32xf32>
    %53 = vector.extract_strided_slice %50 {offsets = [0, 32], sizes = [2, 32], strides = [1, 1]} : vector<2x128xf32> to vector<2x32xf32>
    %54 = vector.extract_strided_slice %51 {offsets = [0, 64], sizes = [2, 32], strides = [1, 1]} : vector<2x128xf32> to vector<2x32xf32>
    %55 = vector.extract_strided_slice %50 {offsets = [0, 96], sizes = [2, 32], strides = [1, 1]} : vector<2x128xf32> to vector<2x32xf32>
    %56 = arith.mulf %53, %40 : vector<2x32xf32>
    %57 = arith.mulf %52, %54 : vector<2x32xf32>
    %58 = arith.addf %56, %57 : vector<2x32xf32>
    %59 = math.tanh %58 : vector<2x32xf32>
    %60 = arith.mulf %55, %59 : vector<2x32xf32>
    %c2 = arith.constant 2 : index
    %c0_15 = arith.constant 0 : index
    %61 = vector.load %arg12[%c2, %c0_15] : memref<16x32xf32, #tpu.memory_space<vmem>>, vector<2x32xf32>
    tpu.vector_store %arg12[%c2, %c0_15], %60 {strides = array<i32>} : memref<16x32xf32, #tpu.memory_space<vmem>>, vector<2x32xf32>,
    %cst_16 = arith.constant dense<0.000000e+00> : vector<2x128xf32>
    %62 = tpu.matmul %60, %1, %cst_16 {dimension_numbers = #tpu.dot_dimension_numbers<[1], [0], [0], [1], [0, 0, 1, 1], [], []>} : vector<2x32xf32>, vector<32x128xf32>, vector<2x128xf32> -> vector<2x128xf32>
    %63 = arith.addf %13, %62 : vector<2x128xf32>
    %64 = arith.negf %63 : vector<2x128xf32>
    %65 = math.exp %64 : vector<2x128xf32>
    %cst_17 = arith.constant 1.000000e+00 : f32
    %66 = vector.broadcast %cst_17 : f32 to vector<2x128xf32>
    %67 = arith.addf %66, %65 : vector<2x128xf32>
    %68 = arith.divf %66, %67 : vector<2x128xf32>
    %69 = math.tanh %63 : vector<2x128xf32>
    %70 = vector.extract_strided_slice %68 {offsets = [0, 0], sizes = [2, 32], strides = [1, 1]} : vector<2x128xf32> to vector<2x32xf32>
    %71 = vector.extract_strided_slice %68 {offsets = [0, 32], sizes = [2, 32], strides = [1, 1]} : vector<2x128xf32> to vector<2x32xf32>
    %72 = vector.extract_strided_slice %69 {offsets = [0, 64], sizes = [2, 32], strides = [1, 1]} : vector<2x128xf32> to vector<2x32xf32>
    %73 = vector.extract_strided_slice %68 {offsets = [0, 96], sizes = [2, 32], strides = [1, 1]} : vector<2x128xf32> to vector<2x32xf32>
    %74 = arith.mulf %71, %58 : vector<2x32xf32>
    %75 = arith.mulf %70, %72 : vector<2x32xf32>
    %76 = arith.addf %74, %75 : vector<2x32xf32>
    %77 = math.tanh %76 : vector<2x32xf32>
    %78 = arith.mulf %73, %77 : vector<2x32xf32>
    %c4 = arith.constant 4 : index
    %c0_18 = arith.constant 0 : index
    %79 = vector.load %arg12[%c4, %c0_18] : memref<16x32xf32, #tpu.memory_space<vmem>>, vector<2x32xf32>
    tpu.vector_store %arg12[%c4, %c0_18], %78 {strides = array<i32>} : memref<16x32xf32, #tpu.memory_space<vmem>>, vector<2x32xf32>,
    %cst_19 = arith.constant dense<0.000000e+00> : vector<2x128xf32>
    %80 = tpu.matmul %78, %1, %cst_19 {dimension_numbers = #tpu.dot_dimension_numbers<[1], [0], [0], [1], [0, 0, 1, 1], [], []>} : vector<2x32xf32>, vector<32x128xf32>, vector<2x128xf32> -> vector<2x128xf32>
    %81 = arith.addf %15, %80 : vector<2x128xf32>
    %82 = arith.negf %81 : vector<2x128xf32>
    %83 = math.exp %82 : vector<2x128xf32>
    %cst_20 = arith.constant 1.000000e+00 : f32
    %84 = vector.broadcast %cst_20 : f32 to vector<2x128xf32>
    %85 = arith.addf %84, %83 : vector<2x128xf32>
    %86 = arith.divf %84, %85 : vector<2x128xf32>
    %87 = math.tanh %81 : vector<2x128xf32>
    %88 = vector.extract_strided_slice %86 {offsets = [0, 0], sizes = [2, 32], strides = [1, 1]} : vector<2x128xf32> to vector<2x32xf32>
    %89 = vector.extract_strided_slice %86 {offsets = [0, 32], sizes = [2, 32], strides = [1, 1]} : vector<2x128xf32> to vector<2x32xf32>
    %90 = vector.extract_strided_slice %87 {offsets = [0, 64], sizes = [2, 32], strides = [1, 1]} : vector<2x128xf32> to vector<2x32xf32>
    %91 = vector.extract_strided_slice %86 {offsets = [0, 96], sizes = [2, 32], strides = [1, 1]} : vector<2x128xf32> to vector<2x32xf32>
    %92 = arith.mulf %89, %76 : vector<2x32xf32>
    %93 = arith.mulf %88, %90 : vector<2x32xf32>
    %94 = arith.addf %92, %93 : vector<2x32xf32>
    %95 = math.tanh %94 : vector<2x32xf32>
    %96 = arith.mulf %91, %95 : vector<2x32xf32>
    %c6 = arith.constant 6 : index
    %c0_21 = arith.constant 0 : index
    %97 = vector.load %arg12[%c6, %c0_21] : memref<16x32xf32, #tpu.memory_space<vmem>>, vector<2x32xf32>
    tpu.vector_store %arg12[%c6, %c0_21], %96 {strides = array<i32>} : memref<16x32xf32, #tpu.memory_space<vmem>>, vector<2x32xf32>,
    %cst_22 = arith.constant dense<0.000000e+00> : vector<2x128xf32>
    %98 = tpu.matmul %96, %1, %cst_22 {dimension_numbers = #tpu.dot_dimension_numbers<[1], [0], [0], [1], [0, 0, 1, 1], [], []>} : vector<2x32xf32>, vector<32x128xf32>, vector<2x128xf32> -> vector<2x128xf32>
    %99 = arith.addf %17, %98 : vector<2x128xf32>
    %100 = arith.negf %99 : vector<2x128xf32>
    %101 = math.exp %100 : vector<2x128xf32>
    %cst_23 = arith.constant 1.000000e+00 : f32
    %102 = vector.broadcast %cst_23 : f32 to vector<2x128xf32>
    %103 = arith.addf %102, %101 : vector<2x128xf32>
    %104 = arith.divf %102, %103 : vector<2x128xf32>
    %105 = math.tanh %99 : vector<2x128xf32>
    %106 = vector.extract_strided_slice %104 {offsets = [0, 0], sizes = [2, 32], strides = [1, 1]} : vector<2x128xf32> to vector<2x32xf32>
    %107 = vector.extract_strided_slice %104 {offsets = [0, 32], sizes = [2, 32], strides = [1, 1]} : vector<2x128xf32> to vector<2x32xf32>
    %108 = vector.extract_strided_slice %105 {offsets = [0, 64], sizes = [2, 32], strides = [1, 1]} : vector<2x128xf32> to vector<2x32xf32>
    %109 = vector.extract_strided_slice %104 {offsets = [0, 96], sizes = [2, 32], strides = [1, 1]} : vector<2x128xf32> to vector<2x32xf32>
    %110 = arith.mulf %107, %94 : vector<2x32xf32>
    %111 = arith.mulf %106, %108 : vector<2x32xf32>
    %112 = arith.addf %110, %111 : vector<2x32xf32>
    %113 = math.tanh %112 : vector<2x32xf32>
    %114 = arith.mulf %109, %113 : vector<2x32xf32>
    %c8 = arith.constant 8 : index
    %c0_24 = arith.constant 0 : index
    %115 = vector.load %arg12[%c8, %c0_24] : memref<16x32xf32, #tpu.memory_space<vmem>>, vector<2x32xf32>
    tpu.vector_store %arg12[%c8, %c0_24], %114 {strides = array<i32>} : memref<16x32xf32, #tpu.memory_space<vmem>>, vector<2x32xf32>,
    %cst_25 = arith.constant dense<0.000000e+00> : vector<2x128xf32>
    %116 = tpu.matmul %114, %1, %cst_25 {dimension_numbers = #tpu.dot_dimension_numbers<[1], [0], [0], [1], [0, 0, 1, 1], [], []>} : vector<2x32xf32>, vector<32x128xf32>, vector<2x128xf32> -> vector<2x128xf32>
    %117 = arith.addf %19, %116 : vector<2x128xf32>
    %118 = arith.negf %117 : vector<2x128xf32>
    %119 = math.exp %118 : vector<2x128xf32>
    %cst_26 = arith.constant 1.000000e+00 : f32
    %120 = vector.broadcast %cst_26 : f32 to vector<2x128xf32>
    %121 = arith.addf %120, %119 : vector<2x128xf32>
    %122 = arith.divf %120, %121 : vector<2x128xf32>
    %123 = math.tanh %117 : vector<2x128xf32>
    %124 = vector.extract_strided_slice %122 {offsets = [0, 0], sizes = [2, 32], strides = [1, 1]} : vector<2x128xf32> to vector<2x32xf32>
    %125 = vector.extract_strided_slice %122 {offsets = [0, 32], sizes = [2, 32], strides = [1, 1]} : vector<2x128xf32> to vector<2x32xf32>
    %126 = vector.extract_strided_slice %123 {offsets = [0, 64], sizes = [2, 32], strides = [1, 1]} : vector<2x128xf32> to vector<2x32xf32>
    %127 = vector.extract_strided_slice %122 {offsets = [0, 96], sizes = [2, 32], strides = [1, 1]} : vector<2x128xf32> to vector<2x32xf32>
    %128 = arith.mulf %125, %112 : vector<2x32xf32>
    %129 = arith.mulf %124, %126 : vector<2x32xf32>
    %130 = arith.addf %128, %129 : vector<2x32xf32>
    %131 = math.tanh %130 : vector<2x32xf32>
    %132 = arith.mulf %127, %131 : vector<2x32xf32>
    %c10 = arith.constant 10 : index
    %c0_27 = arith.constant 0 : index
    %133 = vector.load %arg12[%c10, %c0_27] : memref<16x32xf32, #tpu.memory_space<vmem>>, vector<2x32xf32>
    tpu.vector_store %arg12[%c10, %c0_27], %132 {strides = array<i32>} : memref<16x32xf32, #tpu.memory_space<vmem>>, vector<2x32xf32>,
    %cst_28 = arith.constant dense<0.000000e+00> : vector<2x128xf32>
    %134 = tpu.matmul %132, %1, %cst_28 {dimension_numbers = #tpu.dot_dimension_numbers<[1], [0], [0], [1], [0, 0, 1, 1], [], []>} : vector<2x32xf32>, vector<32x128xf32>, vector<2x128xf32> -> vector<2x128xf32>
    %135 = arith.addf %21, %134 : vector<2x128xf32>
    %136 = arith.negf %135 : vector<2x128xf32>
    %137 = math.exp %136 : vector<2x128xf32>
    %cst_29 = arith.constant 1.000000e+00 : f32
    %138 = vector.broadcast %cst_29 : f32 to vector<2x128xf32>
    %139 = arith.addf %138, %137 : vector<2x128xf32>
    %140 = arith.divf %138, %139 : vector<2x128xf32>
    %141 = math.tanh %135 : vector<2x128xf32>
    %142 = vector.extract_strided_slice %140 {offsets = [0, 0], sizes = [2, 32], strides = [1, 1]} : vector<2x128xf32> to vector<2x32xf32>
    %143 = vector.extract_strided_slice %140 {offsets = [0, 32], sizes = [2, 32], strides = [1, 1]} : vector<2x128xf32> to vector<2x32xf32>
    %144 = vector.extract_strided_slice %141 {offsets = [0, 64], sizes = [2, 32], strides = [1, 1]} : vector<2x128xf32> to vector<2x32xf32>
    %145 = vector.extract_strided_slice %140 {offsets = [0, 96], sizes = [2, 32], strides = [1, 1]} : vector<2x128xf32> to vector<2x32xf32>
    %146 = arith.mulf %143, %130 : vector<2x32xf32>
    %147 = arith.mulf %142, %144 : vector<2x32xf32>
    %148 = arith.addf %146, %147 : vector<2x32xf32>
    %149 = math.tanh %148 : vector<2x32xf32>
    %150 = arith.mulf %145, %149 : vector<2x32xf32>
    %c12 = arith.constant 12 : index
    %c0_30 = arith.constant 0 : index
    %151 = vector.load %arg12[%c12, %c0_30] : memref<16x32xf32, #tpu.memory_space<vmem>>, vector<2x32xf32>
    tpu.vector_store %arg12[%c12, %c0_30], %150 {strides = array<i32>} : memref<16x32xf32, #tpu.memory_space<vmem>>, vector<2x32xf32>,
    %cst_31 = arith.constant dense<0.000000e+00> : vector<2x128xf32>
    %152 = tpu.matmul %150, %1, %cst_31 {dimension_numbers = #tpu.dot_dimension_numbers<[1], [0], [0], [1], [0, 0, 1, 1], [], []>} : vector<2x32xf32>, vector<32x128xf32>, vector<2x128xf32> -> vector<2x128xf32>
    %153 = arith.addf %23, %152 : vector<2x128xf32>
    %154 = arith.negf %153 : vector<2x128xf32>
    %155 = math.exp %154 : vector<2x128xf32>
    %cst_32 = arith.constant 1.000000e+00 : f32
    %156 = vector.broadcast %cst_32 : f32 to vector<2x128xf32>
    %157 = arith.addf %156, %155 : vector<2x128xf32>
    %158 = arith.divf %156, %157 : vector<2x128xf32>
    %159 = math.tanh %153 : vector<2x128xf32>
    %160 = vector.extract_strided_slice %158 {offsets = [0, 0], sizes = [2, 32], strides = [1, 1]} : vector<2x128xf32> to vector<2x32xf32>
    %161 = vector.extract_strided_slice %158 {offsets = [0, 32], sizes = [2, 32], strides = [1, 1]} : vector<2x128xf32> to vector<2x32xf32>
    %162 = vector.extract_strided_slice %159 {offsets = [0, 64], sizes = [2, 32], strides = [1, 1]} : vector<2x128xf32> to vector<2x32xf32>
    %163 = vector.extract_strided_slice %158 {offsets = [0, 96], sizes = [2, 32], strides = [1, 1]} : vector<2x128xf32> to vector<2x32xf32>
    %164 = arith.mulf %161, %148 : vector<2x32xf32>
    %165 = arith.mulf %160, %162 : vector<2x32xf32>
    %166 = arith.addf %164, %165 : vector<2x32xf32>
    %167 = math.tanh %166 : vector<2x32xf32>
    %168 = arith.mulf %163, %167 : vector<2x32xf32>
    %c14 = arith.constant 14 : index
    %c0_33 = arith.constant 0 : index
    %169 = vector.load %arg12[%c14, %c0_33] : memref<16x32xf32, #tpu.memory_space<vmem>>, vector<2x32xf32>
    tpu.vector_store %arg12[%c14, %c0_33], %168 {strides = array<i32>} : memref<16x32xf32, #tpu.memory_space<vmem>>, vector<2x32xf32>,
    %c0_34 = arith.constant 0 : index
    %c0_35 = arith.constant 0 : index
    %170 = vector.load %arg4[%c0_34, %c0_35] : memref<32x128xf32, #tpu.memory_space<vmem>>, vector<32x128xf32>
    %c0_36 = arith.constant 0 : index
    %c0_37 = arith.constant 0 : index
    %171 = vector.load %arg5[%c0_36, %c0_37] : memref<32x128xf32, #tpu.memory_space<vmem>>, vector<32x128xf32>
    %c0_38 = arith.constant 0 : index
    %c0_39 = arith.constant 0 : index
    %172 = vector.load %arg6[%c0_38, %c0_39] : memref<1x128xf32, #tpu.memory_space<vmem>>, vector<1x128xf32>
    %c0_40 = arith.constant 0 : index
    %c0_41 = arith.constant 0 : index
    %173 = vector.load %arg12[%c0_40, %c0_41] : memref<16x32xf32, #tpu.memory_space<vmem>>, vector<16x32xf32>
    %cst_42 = arith.constant dense<0.000000e+00> : vector<16x128xf32>
    %174 = tpu.matmul %173, %170, %cst_42 {dimension_numbers = #tpu.dot_dimension_numbers<[1], [0], [0], [1], [0, 0, 1, 1], [], []>} : vector<16x32xf32>, vector<32x128xf32>, vector<16x128xf32> -> vector<16x128xf32>
    %175 = vector.broadcast %172 : vector<1x128xf32> to vector<16x128xf32>
    %176 = arith.addf %174, %175 : vector<16x128xf32>
    %177 = vector.extract_strided_slice %176 {offsets = [0, 0], sizes = [2, 128], strides = [1, 1]} : vector<16x128xf32> to vector<2x128xf32>
    %178 = vector.extract_strided_slice %176 {offsets = [2, 0], sizes = [2, 128], strides = [1, 1]} : vector<16x128xf32> to vector<2x128xf32>
    %179 = vector.extract_strided_slice %176 {offsets = [4, 0], sizes = [2, 128], strides = [1, 1]} : vector<16x128xf32> to vector<2x128xf32>
    %180 = vector.extract_strided_slice %176 {offsets = [6, 0], sizes = [2, 128], strides = [1, 1]} : vector<16x128xf32> to vector<2x128xf32>
    %181 = vector.extract_strided_slice %176 {offsets = [8, 0], sizes = [2, 128], strides = [1, 1]} : vector<16x128xf32> to vector<2x128xf32>
    %182 = vector.extract_strided_slice %176 {offsets = [10, 0], sizes = [2, 128], strides = [1, 1]} : vector<16x128xf32> to vector<2x128xf32>
    %183 = vector.extract_strided_slice %176 {offsets = [12, 0], sizes = [2, 128], strides = [1, 1]} : vector<16x128xf32> to vector<2x128xf32>
    %184 = vector.extract_strided_slice %176 {offsets = [14, 0], sizes = [2, 128], strides = [1, 1]} : vector<16x128xf32> to vector<2x128xf32>
    %cst_43 = arith.constant 0.000000e+00 : f32
    %185 = vector.broadcast %cst_43 : f32 to vector<2x32xf32>
    %cst_44 = arith.constant 0.000000e+00 : f32
    %186 = vector.broadcast %cst_44 : f32 to vector<2x32xf32>
    %cst_45 = arith.constant dense<0.000000e+00> : vector<2x128xf32>
    %187 = tpu.matmul %185, %171, %cst_45 {dimension_numbers = #tpu.dot_dimension_numbers<[1], [0], [0], [1], [0, 0, 1, 1], [], []>} : vector<2x32xf32>, vector<32x128xf32>, vector<2x128xf32> -> vector<2x128xf32>
    %188 = arith.addf %177, %187 : vector<2x128xf32>
    %189 = arith.negf %188 : vector<2x128xf32>
    %190 = math.exp %189 : vector<2x128xf32>
    %cst_46 = arith.constant 1.000000e+00 : f32
    %191 = vector.broadcast %cst_46 : f32 to vector<2x128xf32>
    %192 = arith.addf %191, %190 : vector<2x128xf32>
    %193 = arith.divf %191, %192 : vector<2x128xf32>
    %194 = math.tanh %188 : vector<2x128xf32>
    %195 = vector.extract_strided_slice %193 {offsets = [0, 0], sizes = [2, 32], strides = [1, 1]} : vector<2x128xf32> to vector<2x32xf32>
    %196 = vector.extract_strided_slice %193 {offsets = [0, 32], sizes = [2, 32], strides = [1, 1]} : vector<2x128xf32> to vector<2x32xf32>
    %197 = vector.extract_strided_slice %194 {offsets = [0, 64], sizes = [2, 32], strides = [1, 1]} : vector<2x128xf32> to vector<2x32xf32>
    %198 = vector.extract_strided_slice %193 {offsets = [0, 96], sizes = [2, 32], strides = [1, 1]} : vector<2x128xf32> to vector<2x32xf32>
    %199 = arith.mulf %196, %186 : vector<2x32xf32>
    %200 = arith.mulf %195, %197 : vector<2x32xf32>
    %201 = arith.addf %199, %200 : vector<2x32xf32>
    %202 = math.tanh %201 : vector<2x32xf32>
    %203 = arith.mulf %198, %202 : vector<2x32xf32>
    %cst_47 = arith.constant dense<0.000000e+00> : vector<2x128xf32>
    %204 = tpu.matmul %203, %171, %cst_47 {dimension_numbers = #tpu.dot_dimension_numbers<[1], [0], [0], [1], [0, 0, 1, 1], [], []>} : vector<2x32xf32>, vector<32x128xf32>, vector<2x128xf32> -> vector<2x128xf32>
    %205 = arith.addf %178, %204 : vector<2x128xf32>
    %206 = arith.negf %205 : vector<2x128xf32>
    %207 = math.exp %206 : vector<2x128xf32>
    %cst_48 = arith.constant 1.000000e+00 : f32
    %208 = vector.broadcast %cst_48 : f32 to vector<2x128xf32>
    %209 = arith.addf %208, %207 : vector<2x128xf32>
    %210 = arith.divf %208, %209 : vector<2x128xf32>
    %211 = math.tanh %205 : vector<2x128xf32>
    %212 = vector.extract_strided_slice %210 {offsets = [0, 0], sizes = [2, 32], strides = [1, 1]} : vector<2x128xf32> to vector<2x32xf32>
    %213 = vector.extract_strided_slice %210 {offsets = [0, 32], sizes = [2, 32], strides = [1, 1]} : vector<2x128xf32> to vector<2x32xf32>
    %214 = vector.extract_strided_slice %211 {offsets = [0, 64], sizes = [2, 32], strides = [1, 1]} : vector<2x128xf32> to vector<2x32xf32>
    %215 = vector.extract_strided_slice %210 {offsets = [0, 96], sizes = [2, 32], strides = [1, 1]} : vector<2x128xf32> to vector<2x32xf32>
    %216 = arith.mulf %213, %201 : vector<2x32xf32>
    %217 = arith.mulf %212, %214 : vector<2x32xf32>
    %218 = arith.addf %216, %217 : vector<2x32xf32>
    %219 = math.tanh %218 : vector<2x32xf32>
    %220 = arith.mulf %215, %219 : vector<2x32xf32>
    %cst_49 = arith.constant dense<0.000000e+00> : vector<2x128xf32>
    %221 = tpu.matmul %220, %171, %cst_49 {dimension_numbers = #tpu.dot_dimension_numbers<[1], [0], [0], [1], [0, 0, 1, 1], [], []>} : vector<2x32xf32>, vector<32x128xf32>, vector<2x128xf32> -> vector<2x128xf32>
    %222 = arith.addf %179, %221 : vector<2x128xf32>
    %223 = arith.negf %222 : vector<2x128xf32>
    %224 = math.exp %223 : vector<2x128xf32>
    %cst_50 = arith.constant 1.000000e+00 : f32
    %225 = vector.broadcast %cst_50 : f32 to vector<2x128xf32>
    %226 = arith.addf %225, %224 : vector<2x128xf32>
    %227 = arith.divf %225, %226 : vector<2x128xf32>
    %228 = math.tanh %222 : vector<2x128xf32>
    %229 = vector.extract_strided_slice %227 {offsets = [0, 0], sizes = [2, 32], strides = [1, 1]} : vector<2x128xf32> to vector<2x32xf32>
    %230 = vector.extract_strided_slice %227 {offsets = [0, 32], sizes = [2, 32], strides = [1, 1]} : vector<2x128xf32> to vector<2x32xf32>
    %231 = vector.extract_strided_slice %228 {offsets = [0, 64], sizes = [2, 32], strides = [1, 1]} : vector<2x128xf32> to vector<2x32xf32>
    %232 = vector.extract_strided_slice %227 {offsets = [0, 96], sizes = [2, 32], strides = [1, 1]} : vector<2x128xf32> to vector<2x32xf32>
    %233 = arith.mulf %230, %218 : vector<2x32xf32>
    %234 = arith.mulf %229, %231 : vector<2x32xf32>
    %235 = arith.addf %233, %234 : vector<2x32xf32>
    %236 = math.tanh %235 : vector<2x32xf32>
    %237 = arith.mulf %232, %236 : vector<2x32xf32>
    %cst_51 = arith.constant dense<0.000000e+00> : vector<2x128xf32>
    %238 = tpu.matmul %237, %171, %cst_51 {dimension_numbers = #tpu.dot_dimension_numbers<[1], [0], [0], [1], [0, 0, 1, 1], [], []>} : vector<2x32xf32>, vector<32x128xf32>, vector<2x128xf32> -> vector<2x128xf32>
    %239 = arith.addf %180, %238 : vector<2x128xf32>
    %240 = arith.negf %239 : vector<2x128xf32>
    %241 = math.exp %240 : vector<2x128xf32>
    %cst_52 = arith.constant 1.000000e+00 : f32
    %242 = vector.broadcast %cst_52 : f32 to vector<2x128xf32>
    %243 = arith.addf %242, %241 : vector<2x128xf32>
    %244 = arith.divf %242, %243 : vector<2x128xf32>
    %245 = math.tanh %239 : vector<2x128xf32>
    %246 = vector.extract_strided_slice %244 {offsets = [0, 0], sizes = [2, 32], strides = [1, 1]} : vector<2x128xf32> to vector<2x32xf32>
    %247 = vector.extract_strided_slice %244 {offsets = [0, 32], sizes = [2, 32], strides = [1, 1]} : vector<2x128xf32> to vector<2x32xf32>
    %248 = vector.extract_strided_slice %245 {offsets = [0, 64], sizes = [2, 32], strides = [1, 1]} : vector<2x128xf32> to vector<2x32xf32>
    %249 = vector.extract_strided_slice %244 {offsets = [0, 96], sizes = [2, 32], strides = [1, 1]} : vector<2x128xf32> to vector<2x32xf32>
    %250 = arith.mulf %247, %235 : vector<2x32xf32>
    %251 = arith.mulf %246, %248 : vector<2x32xf32>
    %252 = arith.addf %250, %251 : vector<2x32xf32>
    %253 = math.tanh %252 : vector<2x32xf32>
    %254 = arith.mulf %249, %253 : vector<2x32xf32>
    %cst_53 = arith.constant dense<0.000000e+00> : vector<2x128xf32>
    %255 = tpu.matmul %254, %171, %cst_53 {dimension_numbers = #tpu.dot_dimension_numbers<[1], [0], [0], [1], [0, 0, 1, 1], [], []>} : vector<2x32xf32>, vector<32x128xf32>, vector<2x128xf32> -> vector<2x128xf32>
    %256 = arith.addf %181, %255 : vector<2x128xf32>
    %257 = arith.negf %256 : vector<2x128xf32>
    %258 = math.exp %257 : vector<2x128xf32>
    %cst_54 = arith.constant 1.000000e+00 : f32
    %259 = vector.broadcast %cst_54 : f32 to vector<2x128xf32>
    %260 = arith.addf %259, %258 : vector<2x128xf32>
    %261 = arith.divf %259, %260 : vector<2x128xf32>
    %262 = math.tanh %256 : vector<2x128xf32>
    %263 = vector.extract_strided_slice %261 {offsets = [0, 0], sizes = [2, 32], strides = [1, 1]} : vector<2x128xf32> to vector<2x32xf32>
    %264 = vector.extract_strided_slice %261 {offsets = [0, 32], sizes = [2, 32], strides = [1, 1]} : vector<2x128xf32> to vector<2x32xf32>
    %265 = vector.extract_strided_slice %262 {offsets = [0, 64], sizes = [2, 32], strides = [1, 1]} : vector<2x128xf32> to vector<2x32xf32>
    %266 = vector.extract_strided_slice %261 {offsets = [0, 96], sizes = [2, 32], strides = [1, 1]} : vector<2x128xf32> to vector<2x32xf32>
    %267 = arith.mulf %264, %252 : vector<2x32xf32>
    %268 = arith.mulf %263, %265 : vector<2x32xf32>
    %269 = arith.addf %267, %268 : vector<2x32xf32>
    %270 = math.tanh %269 : vector<2x32xf32>
    %271 = arith.mulf %266, %270 : vector<2x32xf32>
    %cst_55 = arith.constant dense<0.000000e+00> : vector<2x128xf32>
    %272 = tpu.matmul %271, %171, %cst_55 {dimension_numbers = #tpu.dot_dimension_numbers<[1], [0], [0], [1], [0, 0, 1, 1], [], []>} : vector<2x32xf32>, vector<32x128xf32>, vector<2x128xf32> -> vector<2x128xf32>
    %273 = arith.addf %182, %272 : vector<2x128xf32>
    %274 = arith.negf %273 : vector<2x128xf32>
    %275 = math.exp %274 : vector<2x128xf32>
    %cst_56 = arith.constant 1.000000e+00 : f32
    %276 = vector.broadcast %cst_56 : f32 to vector<2x128xf32>
    %277 = arith.addf %276, %275 : vector<2x128xf32>
    %278 = arith.divf %276, %277 : vector<2x128xf32>
    %279 = math.tanh %273 : vector<2x128xf32>
    %280 = vector.extract_strided_slice %278 {offsets = [0, 0], sizes = [2, 32], strides = [1, 1]} : vector<2x128xf32> to vector<2x32xf32>
    %281 = vector.extract_strided_slice %278 {offsets = [0, 32], sizes = [2, 32], strides = [1, 1]} : vector<2x128xf32> to vector<2x32xf32>
    %282 = vector.extract_strided_slice %279 {offsets = [0, 64], sizes = [2, 32], strides = [1, 1]} : vector<2x128xf32> to vector<2x32xf32>
    %283 = vector.extract_strided_slice %278 {offsets = [0, 96], sizes = [2, 32], strides = [1, 1]} : vector<2x128xf32> to vector<2x32xf32>
    %284 = arith.mulf %281, %269 : vector<2x32xf32>
    %285 = arith.mulf %280, %282 : vector<2x32xf32>
    %286 = arith.addf %284, %285 : vector<2x32xf32>
    %287 = math.tanh %286 : vector<2x32xf32>
    %288 = arith.mulf %283, %287 : vector<2x32xf32>
    %cst_57 = arith.constant dense<0.000000e+00> : vector<2x128xf32>
    %289 = tpu.matmul %288, %171, %cst_57 {dimension_numbers = #tpu.dot_dimension_numbers<[1], [0], [0], [1], [0, 0, 1, 1], [], []>} : vector<2x32xf32>, vector<32x128xf32>, vector<2x128xf32> -> vector<2x128xf32>
    %290 = arith.addf %183, %289 : vector<2x128xf32>
    %291 = arith.negf %290 : vector<2x128xf32>
    %292 = math.exp %291 : vector<2x128xf32>
    %cst_58 = arith.constant 1.000000e+00 : f32
    %293 = vector.broadcast %cst_58 : f32 to vector<2x128xf32>
    %294 = arith.addf %293, %292 : vector<2x128xf32>
    %295 = arith.divf %293, %294 : vector<2x128xf32>
    %296 = math.tanh %290 : vector<2x128xf32>
    %297 = vector.extract_strided_slice %295 {offsets = [0, 0], sizes = [2, 32], strides = [1, 1]} : vector<2x128xf32> to vector<2x32xf32>
    %298 = vector.extract_strided_slice %295 {offsets = [0, 32], sizes = [2, 32], strides = [1, 1]} : vector<2x128xf32> to vector<2x32xf32>
    %299 = vector.extract_strided_slice %296 {offsets = [0, 64], sizes = [2, 32], strides = [1, 1]} : vector<2x128xf32> to vector<2x32xf32>
    %300 = vector.extract_strided_slice %295 {offsets = [0, 96], sizes = [2, 32], strides = [1, 1]} : vector<2x128xf32> to vector<2x32xf32>
    %301 = arith.mulf %298, %286 : vector<2x32xf32>
    %302 = arith.mulf %297, %299 : vector<2x32xf32>
    %303 = arith.addf %301, %302 : vector<2x32xf32>
    %304 = math.tanh %303 : vector<2x32xf32>
    %305 = arith.mulf %300, %304 : vector<2x32xf32>
    %cst_59 = arith.constant dense<0.000000e+00> : vector<2x128xf32>
    %306 = tpu.matmul %305, %171, %cst_59 {dimension_numbers = #tpu.dot_dimension_numbers<[1], [0], [0], [1], [0, 0, 1, 1], [], []>} : vector<2x32xf32>, vector<32x128xf32>, vector<2x128xf32> -> vector<2x128xf32>
    %307 = arith.addf %184, %306 : vector<2x128xf32>
    %308 = arith.negf %307 : vector<2x128xf32>
    %309 = math.exp %308 : vector<2x128xf32>
    %cst_60 = arith.constant 1.000000e+00 : f32
    %310 = vector.broadcast %cst_60 : f32 to vector<2x128xf32>
    %311 = arith.addf %310, %309 : vector<2x128xf32>
    %312 = arith.divf %310, %311 : vector<2x128xf32>
    %313 = math.tanh %307 : vector<2x128xf32>
    %314 = vector.extract_strided_slice %312 {offsets = [0, 0], sizes = [2, 32], strides = [1, 1]} : vector<2x128xf32> to vector<2x32xf32>
    %315 = vector.extract_strided_slice %312 {offsets = [0, 32], sizes = [2, 32], strides = [1, 1]} : vector<2x128xf32> to vector<2x32xf32>
    %316 = vector.extract_strided_slice %313 {offsets = [0, 64], sizes = [2, 32], strides = [1, 1]} : vector<2x128xf32> to vector<2x32xf32>
    %317 = vector.extract_strided_slice %312 {offsets = [0, 96], sizes = [2, 32], strides = [1, 1]} : vector<2x128xf32> to vector<2x32xf32>
    %318 = arith.mulf %315, %303 : vector<2x32xf32>
    %319 = arith.mulf %314, %316 : vector<2x32xf32>
    %320 = arith.addf %318, %319 : vector<2x32xf32>
    %321 = math.tanh %320 : vector<2x32xf32>
    %322 = arith.mulf %317, %321 : vector<2x32xf32>
    %c0_61 = arith.constant 0 : index
    %c0_62 = arith.constant 0 : index
    %323 = vector.load %arg7[%c0_61, %c0_62] : memref<32x32xf32, #tpu.memory_space<vmem>>, vector<32x32xf32>
    %cst_63 = arith.constant dense<0.000000e+00> : vector<2x32xf32>
    %324 = tpu.matmul %322, %323, %cst_63 {dimension_numbers = #tpu.dot_dimension_numbers<[1], [0], [0], [1], [0, 0, 1, 1], [], []>} : vector<2x32xf32>, vector<32x32xf32>, vector<2x32xf32> -> vector<2x32xf32>
    %c0_64 = arith.constant 0 : index
    %c0_65 = arith.constant 0 : index
    %325 = vector.load %arg8[%c0_64, %c0_65] : memref<1x32xf32, #tpu.memory_space<vmem>>, vector<1x32xf32>
    %326 = vector.broadcast %325 : vector<1x32xf32> to vector<2x32xf32>
    %327 = arith.addf %324, %326 : vector<2x32xf32>
    %cst_66 = arith.constant 0.000000e+00 : f32
    %328 = vector.broadcast %cst_66 : f32 to vector<2x32xf32>
    %329 = arith.maximumf %327, %328 : vector<2x32xf32>
    %c0_67 = arith.constant 0 : index
    %c0_68 = arith.constant 0 : index
    %330 = vector.load %arg9[%c0_67, %c0_68] : memref<32x1xf32, #tpu.memory_space<vmem>>, vector<32x1xf32>
    %cst_69 = arith.constant dense<0.000000e+00> : vector<2x1xf32>
    %331 = tpu.matmul %329, %330, %cst_69 {dimension_numbers = #tpu.dot_dimension_numbers<[1], [0], [0], [1], [0, 0, 1, 1], [], []>} : vector<2x32xf32>, vector<32x1xf32>, vector<2x1xf32> -> vector<2x1xf32>
    %c0_70 = arith.constant 0 : index
    %c0_71 = arith.constant 0 : index
    %332 = vector.load %arg10[%c0_70, %c0_71] : memref<1x1xf32, #tpu.memory_space<vmem>>, vector<1x1xf32>
    %333 = vector.broadcast %332 : vector<1x1xf32> to vector<2x1xf32>
    %334 = arith.addf %331, %333 : vector<2x1xf32>
    %c0_72 = arith.constant 0 : index
    %c0_73 = arith.constant 0 : index
    %335 = vector.load %arg11[%c0_72, %c0_73] : memref<2x1xf32, #tpu.memory_space<vmem>>, vector<2x1xf32>
    tpu.vector_store %arg11[%c0_72, %c0_73], %334 {strides = array<i32>} : memref<2x1xf32, #tpu.memory_space<vmem>>, vector<2x1xf32>,
    return
  }
}

</mosaic_0001>

<llo_original>
// kernel: stock_model_forward.1
$region0: #{stock_model_forward.1}
  #allocation0 [shape = 'u32[]', space=smem, size = 0x4, offset = 0x4, fixed_abs, tag = 'smem constant byte address 0x4 - core index']
  #allocation1 [shape = 'u32[144,128]{1,0:T(1,128)}', space=vmem, size = 0x12000, scoped, tag = 'internal scratch']
  #allocation2 [shape = 'f32[16,32]{1,0:T(8,128)}', space=vmem, size = 0x2000, scoped, tag = 'scratch operand']
  #allocation3 [shape = 'f32[1,1]{1,0:T(1,128)S(1)}', space=vmem, size = 0x200, scoped, tag = 'scoped memory for stock_model_forward.1']
  %s0 = inlined_call_operand.vmem [shape: f32[16,4], index: 0, kind: input, shape index: {}]
  %s1 = inlined_call_operand.vmem [shape: f32[4,128], index: 1, kind: input, shape index: {}]
  %s2 = inlined_call_operand.vmem [shape: f32[32,128], index: 2, kind: input, shape index: {}]
  %s3 = inlined_call_operand.vmem [shape: f32[1,128], index: 3, kind: input, shape index: {}]
  %s4 = inlined_call_operand.vmem [shape: f32[32,128], index: 4, kind: input, shape index: {}]
  %s5 = inlined_call_operand.hbm [shape: f32[32,128], index: 5, kind: input, shape index: {}]
  %s6 = inlined_call_operand.vmem [shape: f32[1,128], index: 6, kind: input, shape index: {}]
  %s7 = inlined_call_operand.hbm [shape: f32[32,32], index: 7, kind: input, shape index: {}]
  %s8 = inlined_call_operand.vmem [shape: f32[1,32], index: 8, kind: input, shape index: {}]
  %s9 = inlined_call_operand.vmem [shape: f32[32,1], index: 9, kind: input, shape index: {}]
  %s10 = inlined_call_operand.<no memory space> [shape: f32[1,1], index: 10, kind: input, shape index: {}]
  %s11 = inlined_call_operand.vmem [shape: f32[2,1], index: 11, kind: output, shape index: {}]
  %s12 = sld [smem:[#allocation0]]
  $region62: #{stock_model_forward.1} parent=0
    _
  %s14 = ssub.s32 1, %s12
  %s15 = scalar_select 0, %s14, %s12
  %v16 = vstv %s10
  %17 = vst [vmem:[#allocation3] sm:$0x1] %v16
  $region1: #{stock_model_forward.1} parent=0
    #allocation4 [shape = 'u8[16384]{0}', space=vmem, size = 0x4000, scoped, tag = 'input window, operand 5, single buffered']
    #allocation5 [shape = 's32[1]{0}', space=sflag, size = 0x4, scoped, tag = 'scoped memory for stock_model_forward.1']
    #allocation6 [shape = 'u8[16384]{0}', space=vmem, size = 0x4000, scoped, tag = 'input window, operand 7, single buffered']
    #allocation7 [shape = 's32[1]{0}', space=sflag, size = 0x4, scoped, tag = 'scoped memory for stock_model_forward.1']
    %18 = vsyncpa [#allocation5], 0
    %19 = vsyncpa [#allocation7], 0
    // Predicated region
    $region2: #{stock_model_forward.1} parent=1 // pred_check
      _
    $region3: #{stock_model_forward.1} parent=1 // pred_check_branch
      %21 = sbr.rel (0) target = $region5
    $region4: #{stock_model_forward.1} parent=1 // pred_region
      _
    $region5: #{stock_model_forward.1} parent=1 // pred_fallthru
      _
    // Predicated region
    $region6: #{stock_model_forward.1} parent=1 // pred_check
      _
    $region7: #{stock_model_forward.1} parent=1 // pred_check_branch
      %23 = sbr.rel (0) target = $region9
    $region8: #{stock_model_forward.1} parent=1 // pred_region
      _
    $region9: #{stock_model_forward.1} parent=1 // pred_fallthru
      _
    // Predicated region
    $region10: #{stock_model_forward.1} parent=1 // pred_check
      _
    $region11: #{stock_model_forward.1} parent=1 // pred_check_branch
      %25 = sbr.rel (0) target = $region13
    $region12: #{stock_model_forward.1} parent=1 // pred_region
      _
    $region13: #{stock_model_forward.1} parent=1 // pred_fallthru
      _
    // Predicated region
    $region14: #{stock_model_forward.1} parent=1 // pred_check
      _
    $region15: #{stock_model_forward.1} parent=1 // pred_check_branch
      %27 = sbr.rel (0) target = $region17
    $region16: #{stock_model_forward.1} parent=1 // pred_region
      _
    $region17: #{stock_model_forward.1} parent=1 // pred_fallthru
      _
    // Predicated region
    $region18: #{stock_model_forward.1} parent=1 // pred_check
      _
    $region19: #{stock_model_forward.1} parent=1 // pred_check_branch
      %29 = sbr.rel (0) target = $region21
    $region20: #{stock_model_forward.1} parent=1 // pred_region
      _
    $region21: #{stock_model_forward.1} parent=1 // pred_fallthru
      _
    // Predicated region
    $region22: #{stock_model_forward.1} parent=1 // pred_check
      _
    $region23: #{stock_model_forward.1} parent=1 // pred_check_branch
      %31 = sbr.rel (0) target = $region25
    $region24: #{stock_model_forward.1} parent=1 // pred_region
      %s33 = ssub.s32 512, 512
      %34 = vsyncadd [#allocation5], %s33
      %s35 = sshll.u32 [#allocation4], 4
      %s36 = int_to_ptr.vmem [resolvable:$true] %s35
      %41 = dma.hbm_to_vmem [thread:$0]  %s5, 512, %s36, [#allocation5], 128, 128, 8
    $region25: #{stock_model_forward.1} parent=1 // pred_fallthru
      _
    // Predicated region
    $region26: #{stock_model_forward.1} parent=1 // pred_check
      _
    $region27: #{stock_model_forward.1} parent=1 // pred_check_branch
      %43 = sbr.rel (0) target = $region29
    $region28: #{stock_model_forward.1} parent=1 // pred_region
      _
    $region29: #{stock_model_forward.1} parent=1 // pred_fallthru
      _
    // Predicated region
    $region30: #{stock_model_forward.1} parent=1 // pred_check
      _
    $region31: #{stock_model_forward.1} parent=1 // pred_check_branch
      %45 = sbr.rel (0) target = $region33
    $region32: #{stock_model_forward.1} parent=1 // pred_region
      %s47 = ssub.s32 512, 512
      %48 = vsyncadd [#allocation7], %s47
      %s49 = sshll.u32 [#allocation6], 4
      %s50 = int_to_ptr.vmem [resolvable:$true] %s49
      %55 = dma.hbm_to_vmem [thread:$0]  %s7, 512, %s50, [#allocation7], 128, 128, 8
    $region33: #{stock_model_forward.1} parent=1 // pred_fallthru
      _
    // Predicated region
    $region34: #{stock_model_forward.1} parent=1 // pred_check
      _
    $region35: #{stock_model_forward.1} parent=1 // pred_check_branch
      %57 = sbr.rel (0) target = $region37
    $region36: #{stock_model_forward.1} parent=1 // pred_region
      _
    $region37: #{stock_model_forward.1} parent=1 // pred_fallthru
      _
    // Predicated region
    $region38: #{stock_model_forward.1} parent=1 // pred_check
      _
    $region39: #{stock_model_forward.1} parent=1 // pred_check_branch
      %59 = sbr.rel (0) target = $region41
    $region40: #{stock_model_forward.1} parent=1 // pred_region
      _
    $region41: #{stock_model_forward.1} parent=1 // pred_fallthru
      _
    // Predicated region
    $region42: #{stock_model_forward.1} parent=1 // pred_check
      _
    $region43: #{stock_model_forward.1} parent=1 // pred_check_branch
      %61 = sbr.rel (0) target = $region45
    $region44: #{stock_model_forward.1} parent=1 // pred_region
      _
    $region45: #{stock_model_forward.1} parent=1 // pred_fallthru
      _
    // Predicated region
    $region46: #{stock_model_forward.1} parent=1 // pred_check
      _
    $region47: #{stock_model_forward.1} parent=1 // pred_check_branch
      %63 = sbr.rel (0) target = $region49
    $region48: #{stock_model_forward.1} parent=1 // pred_region
      %64 = dma.done [#allocation5], 512
    $region49: #{stock_model_forward.1} parent=1 // pred_fallthru
      _
    // Predicated region
    $region50: #{stock_model_forward.1} parent=1 // pred_check
      _
    $region51: #{stock_model_forward.1} parent=1 // pred_check_branch
      %66 = sbr.rel (0) target = $region53
    $region52: #{stock_model_forward.1} parent=1 // pred_region
      %67 = dma.done [#allocation7], 512
    $region53: #{stock_model_forward.1} parent=1 // pred_fallthru
      _
    %v68 = vld [vmem:[%s1] sm:$0xf]
    %v69 = vld [vmem:[%s2] sm:$0xff]
    %v70 = vld [vmem:[%s2 + $0x8] sm:$0xff]
    %v71 = vld [vmem:[%s2 + $0x10] sm:$0xff]
    %v72 = vld [vmem:[%s2 + $0x18] sm:$0xff]
    %v73 = vld [vmem:[%s3] sm:$0x1]
    %v74 = vld [vmem:[%s0] sm:$0xff]
    %v75 = vld [vmem:[%s0 + $0x8] sm:$0xff]
    %v77 = vlaneseq
    %v78 = vshrl.u32 %v77, 7
    %v79 = vsub.s32 0, %v78
    %v80 = vrot.slane %v73, %v79
    %vm82 = vcmask 31744
    %v84 = vsel %vm82, %v74, 0
    %v87 = vsel %vm82, %v75, 0
    %vm89 = vcmask 1043456
    %v91 = vsel %vm89, %v68, 0
    %93 = vmatprep.subr.mxu0 0.0
    %94 = vmatpush1.msra.mxu0 %v91
    %95 = vmatprep.subr.mxu0 0.0
    %96 = vmatpush1.msra.mxu0 0.0
    %97 = vmatprep.subr.mxu0 0.0
    %98 = vmatpush1.msra.mxu0 0.0
    %99 = vmatprep.subr.mxu0 0.0
    %100 = vmatpush1.msra.mxu0 0.0
    %101 = vmatprep.subr.mxu0 0.0
    %102 = vmatpush1.msra.mxu0 0.0
    %103 = vmatprep.subr.mxu0 0.0
    %104 = vmatpush1.msra.mxu0 0.0
    %105 = vmatprep.subr.mxu0 0.0
    %106 = vmatpush1.msra.mxu0 0.0
    %107 = vmatprep.subr.mxu0 0.0
    %108 = vmatpush1.msra.mxu0 0.0
    %109 = vmatprep.subr.mxu0 0.0
    %110 = vmatpush1.msra.mxu0 0.0
    %111 = vmatprep.subr.mxu0 0.0
    %112 = vmatpush1.msra.mxu0 0.0
    %113 = vmatprep.subr.mxu0 0.0
    %114 = vmatpush1.msra.mxu0 0.0
    %115 = vmatprep.subr.mxu0 0.0
    %116 = vmatpush1.msra.mxu0 0.0
    %117 = vmatprep.subr.mxu0 0.0
    %118 = vmatpush1.msra.mxu0 0.0
    %119 = vmatprep.subr.mxu0 0.0
    %120 = vmatpush1.msra.mxu0 0.0
    %121 = vmatprep.subr.mxu0 0.0
    %122 = vmatpush1.msra.mxu0 0.0
    %123 = vmatprep.subr.mxu0 0.0
    %124 = vmatpush1.msra.mxu0 0.0
    %125 = vmatprep.subr.mxu0 0.0
    %126 = vmatpush1.msra.mxu0 0.0
    %127 = vmatprep.subr.mxu0 0.0
    %128 = vmatpush1.msra.mxu0 0.0
    %129 = vmatprep.subr.mxu0 0.0
    %130 = vmatpush1.msra.mxu0 0.0
    %131 = vmatprep.subr.mxu0 0.0
    %132 = vmatpush1.msra.mxu0 0.0
    %133 = vmatprep.subr.mxu0 0.0
    %134 = vmatpush1.msra.mxu0 0.0
    %135 = vmatprep.subr.mxu0 0.0
    %136 = vmatpush1.msra.mxu0 0.0
    %137 = vmatprep.subr.mxu0 0.0
    %138 = vmatpush1.msra.mxu0 0.0
    %139 = vmatprep.subr.mxu0 0.0
    %140 = vmatpush1.msra.mxu0 0.0
    %141 = vmatprep.subr.mxu0 0.0
    %142 = vmatpush1.msra.mxu0 0.0
    %143 = vmatprep.subr.mxu0 0.0
    %144 = vmatpush1.msra.mxu0 0.0
    %145 = vmatprep.subr.mxu0 0.0
    %146 = vmatpush1.msra.mxu0 0.0
    %147 = vmatprep.subr.mxu0 0.0
    %148 = vmatpush1.msra.mxu0 0.0
    %149 = vmatprep.subr.mxu0 0.0
    %150 = vmatpush1.msra.mxu0 0.0
    %151 = vmatprep.subr.mxu0 0.0
    %152 = vmatpush1.msra.mxu0 0.0
    %153 = vmatprep.subr.mxu0 0.0
    %154 = vmatpush1.msra.mxu0 0.0
    %155 = vmatprep.subr.mxu0 0.0
    %156 = vmatpush1.msra.mxu0 0.0
    %157 = vmatprep.mubr.f32.mxu0 0.0
    %158 = vmatmul.mubr.f32.gmra.mrb[0].mxu0 %v84
    %v159 = vpop.f32.mrb[0].mxu0
    %v160 = vadd.f32 %v80, %v159
    %v161 = vpop.f32.mrb[0].mxu0
    %162 = vmatprep.mubr.f32.mxu0 0.0
    %163 = vmatmul.mubr.f32.gmra.mrb[0].mxu0 %v87
    %v164 = vpop.f32.mrb[0].mxu0
    %v165 = vadd.f32 %v80, %v164
    %v166 = vpop.f32.mrb[0].mxu0
    %167 = vdwg.mxu0
    %vm168 = vcmask 261120
    %v170 = vsel %vm168, 0.0, 0
    %172 = vmatprep.subr.mxu0 0.0
    %173 = vmatpush1.msra.mxu0 %v69
    %174 = vmatprep.subr.mxu0 0.0
    %175 = vmatpush1.msra.mxu0 %v70
    %176 = vmatprep.subr.mxu0 0.0
    %177 = vmatpush1.msra.mxu0 %v71
    %178 = vmatprep.subr.mxu0 0.0
    %179 = vmatpush1.msra.mxu0 %v72
    %180 = vmatprep.subr.mxu0 0.0
    %181 = vmatpush1.msra.mxu0 0.0
    %182 = vmatprep.subr.mxu0 0.0
    %183 = vmatpush1.msra.mxu0 0.0
    %184 = vmatprep.subr.mxu0 0.0
    %185 = vmatpush1.msra.mxu0 0.0
    %186 = vmatprep.subr.mxu0 0.0
    %187 = vmatpush1.msra.mxu0 0.0
    %188 = vmatprep.subr.mxu0 0.0
    %189 = vmatpush1.msra.mxu0 0.0
    %190 = vmatprep.subr.mxu0 0.0
    %191 = vmatpush1.msra.mxu0 0.0
    %192 = vmatprep.subr.mxu0 0.0
    %193 = vmatpush1.msra.mxu0 0.0
    %194 = vmatprep.subr.mxu0 0.0
    %195 = vmatpush1.msra.mxu0 0.0
    %196 = vmatprep.subr.mxu0 0.0
    %197 = vmatpush1.msra.mxu0 0.0
    %198 = vmatprep.subr.mxu0 0.0
    %199 = vmatpush1.msra.mxu0 0.0
    %200 = vmatprep.subr.mxu0 0.0
    %201 = vmatpush1.msra.mxu0 0.0
    %202 = vmatprep.subr.mxu0 0.0
    %203 = vmatpush1.msra.mxu0 0.0
    %204 = vmatprep.subr.mxu0 0.0
    %205 = vmatpush1.msra.mxu0 0.0
    %206 = vmatprep.subr.mxu0 0.0
    %207 = vmatpush1.msra.mxu0 0.0
    %208 = vmatprep.subr.mxu0 0.0
    %209 = vmatpush1.msra.mxu0 0.0
    %210 = vmatprep.subr.mxu0 0.0
    %211 = vmatpush1.msra.mxu0 0.0
    %212 = vmatprep.subr.mxu0 0.0
    %213 = vmatpush1.msra.mxu0 0.0
    %214 = vmatprep.subr.mxu0 0.0
    %215 = vmatpush1.msra.mxu0 0.0
    %216 = vmatprep.subr.mxu0 0.0
    %217 = vmatpush1.msra.mxu0 0.0
    %218 = vmatprep.subr.mxu0 0.0
    %219 = vmatpush1.msra.mxu0 0.0
    %220 = vmatprep.subr.mxu0 0.0
    %221 = vmatpush1.msra.mxu0 0.0
    %222 = vmatprep.subr.mxu0 0.0
    %223 = vmatpush1.msra.mxu0 0.0
    %224 = vmatprep.subr.mxu0 0.0
    %225 = vmatpush1.msra.mxu0 0.0
    %226 = vmatprep.subr.mxu0 0.0
    %227 = vmatpush1.msra.mxu0 0.0
    %228 = vmatprep.subr.mxu0 0.0
    %229 = vmatpush1.msra.mxu0 0.0
    %230 = vmatprep.subr.mxu0 0.0
    %231 = vmatpush1.msra.mxu0 0.0
    %232 = vmatprep.subr.mxu0 0.0
    %233 = vmatpush1.msra.mxu0 0.0
    %234 = vmatprep.subr.mxu0 0.0
    %235 = vmatpush1.msra.mxu0 0.0
    %236 = vmatprep.mubr.f32.mxu0 0.0
    %237 = vmatmul.mubr.f32.gmra.mrb[0].mxu0 %v170
    %v238 = vpop.f32.mrb[0].mxu0
    %v239 = vadd.f32 0.0, %v238
    %v240 = vpop.f32.mrb[0].mxu0
    %241 = vdwg.mxu0
    %v243 = vrot.slane %v239, 1
    %v246 = vadd.f32 %v160, %v239
    %v247 = vadd.f32 %v165, %v243
    %v248 = vxor.u32 %v246, 2147483648
    %v249 = vxor.u32 %v247, 2147483648
    %v250 = vmul.f32 %v248, 1.442695
    %v251 = vpow.pop %v250
    %v252 = vmul.f32 %v249, 1.442695
    %v253 = vpow.pop %v252
    %v254 = vadd.f32 %v251, 1.0
    %v255 = vadd.f32 %v253, 1.0
    %v256 = vrcp.pop %v254
    %v257 = vmul.f32 1.0, %v256
    %v258 = vrcp.pop %v255
    %v259 = vmul.f32 1.0, %v258
    %v260 = vtanh.pop %v246
    %v261 = vtanh.pop %v247
    %v262 = vmul.f32 %v257, 0.0
    %v263 = vmul.f32 %v259, 0.0
    %266 = vrot.lane.b32.xlu0 %v260, 64
    %v267 = vpop.permute.xlu0 %266
    %268 = vrot.lane.b32.xlu0 %v261, 64
    %v269 = vpop.permute.xlu0 %268
    %v272 = vmul.f32 %v257, %v267
    %v273 = vmul.f32 %v259, %v269
    %276 = vrot.lane.b32.xlu0 %v272, 32
    %v277 = vpop.permute.xlu0 %276
    %278 = vrot.lane.b32.xlu0 %v273, 32
    %v279 = vpop.permute.xlu0 %278
    %v282 = vadd.f32 %v262, %v277
    %v283 = vadd.f32 %v263, %v279
    %v284 = vtanh.pop %v282
    %v285 = vtanh.pop %v283
    %288 = vrot.lane.b32.xlu0 %v284, 64
    %v289 = vpop.permute.xlu0 %288
    %290 = vrot.lane.b32.xlu0 %v285, 64
    %v291 = vpop.permute.xlu0 %290
    %v294 = vmul.f32 %v257, %v289
    %v295 = vmul.f32 %v259, %v291
    %v298 = vrot.slane %v295, 7
    %vm299 = vcmask 1041409
    %v300 = vsel %vm299, %v298, %v294
    %301 = vrot.lane.b32.xlu0 %v300, 32
    %v302 = vpop.permute.xlu0 %301
    %vm304 = vcmask 254976
    %305 = vst.msk [vmem:[#allocation2] sm:$0x3] %vm304, %v302
    %v306 = vsel %vm168, %v302, 0
    %308 = vmatprep.subr.mxu0 0.0
    %309 = vmatpush1.msra.mxu0 %v69
    %310 = vmatprep.subr.mxu0 0.0
    %311 = vmatpush1.msra.mxu0 %v70
    %312 = vmatprep.subr.mxu0 0.0
    %313 = vmatpush1.msra.mxu0 %v71
    %314 = vmatprep.subr.mxu0 0.0
    %315 = vmatpush1.msra.mxu0 %v72
    %316 = vmatprep.subr.mxu0 0.0
    %317 = vmatpush1.msra.mxu0 0.0
    %318 = vmatprep.subr.mxu0 0.0
    %319 = vmatpush1.msra.mxu0 0.0
    %320 = vmatprep.subr.mxu0 0.0
    %321 = vmatpush1.msra.mxu0 0.0
    %322 = vmatprep.subr.mxu0 0.0
    %323 = vmatpush1.msra.mxu0 0.0
    %324 = vmatprep.subr.mxu0 0.0
    %325 = vmatpush1.msra.mxu0 0.0
    %326 = vmatprep.subr.mxu0 0.0
    %327 = vmatpush1.msra.mxu0 0.0
    %328 = vmatprep.subr.mxu0 0.0
    %329 = vmatpush1.msra.mxu0 0.0
    %330 = vmatprep.subr.mxu0 0.0
    %331 = vmatpush1.msra.mxu0 0.0
    %332 = vmatprep.subr.mxu0 0.0
    %333 = vmatpush1.msra.mxu0 0.0
    %334 = vmatprep.subr.mxu0 0.0
    %335 = vmatpush1.msra.mxu0 0.0
    %336 = vmatprep.subr.mxu0 0.0
    %337 = vmatpush1.msra.mxu0 0.0
    %338 = vmatprep.subr.mxu0 0.0
    %339 = vmatpush1.msra.mxu0 0.0
    %340 = vmatprep.subr.mxu0 0.0
    %341 = vmatpush1.msra.mxu0 0.0
    %342 = vmatprep.subr.mxu0 0.0
    %343 = vmatpush1.msra.mxu0 0.0
    %344 = vmatprep.subr.mxu0 0.0
    %345 = vmatpush1.msra.mxu0 0.0
    %346 = vmatprep.subr.mxu0 0.0
    %347 = vmatpush1.msra.mxu0 0.0
    %348 = vmatprep.subr.mxu0 0.0
    %349 = vmatpush1.msra.mxu0 0.0
    %350 = vmatprep.subr.mxu0 0.0
    %351 = vmatpush1.msra.mxu0 0.0
    %352 = vmatprep.subr.mxu0 0.0
    %353 = vmatpush1.msra.mxu0 0.0
    %354 = vmatprep.subr.mxu0 0.0
    %355 = vmatpush1.msra.mxu0 0.0
    %356 = vmatprep.subr.mxu0 0.0
    %357 = vmatpush1.msra.mxu0 0.0
    %358 = vmatprep.subr.mxu0 0.0
    %359 = vmatpush1.msra.mxu0 0.0
    %360 = vmatprep.subr.mxu0 0.0
    %361 = vmatpush1.msra.mxu0 0.0
    %362 = vmatprep.subr.mxu0 0.0
    %363 = vmatpush1.msra.mxu0 0.0
    %364 = vmatprep.subr.mxu0 0.0
    %365 = vmatpush1.msra.mxu0 0.0
    %366 = vmatprep.subr.mxu0 0.0
    %367 = vmatpush1.msra.mxu0 0.0
    %368 = vmatprep.subr.mxu0 0.0
    %369 = vmatpush1.msra.mxu0 0.0
    %370 = vmatprep.subr.mxu0 0.0
    %371 = vmatpush1.msra.mxu0 0.0
    %372 = vmatprep.mubr.f32.mxu0 0.0
    %373 = vmatmul.mubr.f32.gmra.mrb[0].mxu0 %v306
    %v374 = vpop.f32.mrb[0].mxu0
    %v375 = vadd.f32 0.0, %v374
    %v376 = vpop.f32.mrb[0].mxu0
    %377 = vdwg.mxu0
    %v379 = vrot.slane %v375, 7
    %v382 = vadd.f32 %v160, %v379
    %v383 = vadd.f32 %v165, %v375
    %v384 = vxor.u32 %v382, 2147483648
    %v385 = vxor.u32 %v383, 2147483648
    %v386 = vmul.f32 %v384, 1.442695
    %v387 = vpow.pop %v386
    %v388 = vmul.f32 %v385, 1.442695
    %v389 = vpow.pop %v388
    %v390 = vadd.f32 %v387, 1.0
    %v391 = vadd.f32 %v389, 1.0
    %v392 = vrcp.pop %v390
    %v393 = vmul.f32 1.0, %v392
    %v394 = vrcp.pop %v391
    %v395 = vmul.f32 1.0, %v394
    %v396 = vtanh.pop %v382
    %v397 = vtanh.pop %v383
    %v400 = vrot.slane %v282, 7
    %v401 = vrot.slane %v283, 7
    %v404 = vmul.f32 %v393, %v400
    %v405 = vmul.f32 %v395, %v401
    %408 = vrot.lane.b32.xlu0 %v396, 64
    %v409 = vpop.permute.xlu0 %408
    %410 = vrot.lane.b32.xlu0 %v397, 64
    %v411 = vpop.permute.xlu0 %410
    %v414 = vmul.f32 %v393, %v409
    %v415 = vmul.f32 %v395, %v411
    %418 = vrot.lane.b32.xlu0 %v414, 32
    %v419 = vpop.permute.xlu0 %418
    %420 = vrot.lane.b32.xlu0 %v415, 32
    %v421 = vpop.permute.xlu0 %420
    %v424 = vadd.f32 %v404, %v419
    %v425 = vadd.f32 %v405, %v421
    %v426 = vtanh.pop %v424
    %v427 = vtanh.pop %v425
    %430 = vrot.lane.b32.xlu0 %v426, 64
    %v431 = vpop.permute.xlu0 %430
    %432 = vrot.lane.b32.xlu0 %v427, 64
    %v433 = vpop.permute.xlu0 %432
    %v436 = vmul.f32 %v393, %v431
    %v437 = vmul.f32 %v395, %v433
    %v440 = vrot.slane %v437, 7
    %vm441 = vcmask 1042434
    %v442 = vsel %vm441, %v440, %v436
    %443 = vrot.lane.b32.xlu0 %v442, 32
    %v444 = vpop.permute.xlu0 %443
    %vm446 = vcmask 256001
    %447 = vst.msk [vmem:[#allocation2 + $0x1] sm:$0x6] %vm446, %v444
    %v448 = vrot.slane %v436, 1
    %v449 = vsel %vm299, %v437, %v448
    %450 = vrot.lane.b32.xlu0 %v449, 32
    %v451 = vpop.permute.xlu0 %450
    %v452 = vsel %vm168, %v451, 0
    %454 = vmatprep.subr.mxu0 0.0
    %455 = vmatpush1.msra.mxu0 %v69
    %456 = vmatprep.subr.mxu0 0.0
    %457 = vmatpush1.msra.mxu0 %v70
    %458 = vmatprep.subr.mxu0 0.0
    %459 = vmatpush1.msra.mxu0 %v71
    %460 = vmatprep.subr.mxu0 0.0
    %461 = vmatpush1.msra.mxu0 %v72
    %462 = vmatprep.subr.mxu0 0.0
    %463 = vmatpush1.msra.mxu0 0.0
    %464 = vmatprep.subr.mxu0 0.0
    %465 = vmatpush1.msra.mxu0 0.0
    %466 = vmatprep.subr.mxu0 0.0
    %467 = vmatpush1.msra.mxu0 0.0
    %468 = vmatprep.subr.mxu0 0.0
    %469 = vmatpush1.msra.mxu0 0.0
    %470 = vmatprep.subr.mxu0 0.0
    %471 = vmatpush1.msra.mxu0 0.0
    %472 = vmatprep.subr.mxu0 0.0
    %473 = vmatpush1.msra.mxu0 0.0
    %474 = vmatprep.subr.mxu0 0.0
    %475 = vmatpush1.msra.mxu0 0.0
    %476 = vmatprep.subr.mxu0 0.0
    %477 = vmatpush1.msra.mxu0 0.0
    %478 = vmatprep.subr.mxu0 0.0
    %479 = vmatpush1.msra.mxu0 0.0
    %480 = vmatprep.subr.mxu0 0.0
    %481 = vmatpush1.msra.mxu0 0.0
    %482 = vmatprep.subr.mxu0 0.0
    %483 = vmatpush1.msra.mxu0 0.0
    %484 = vmatprep.subr.mxu0 0.0
    %485 = vmatpush1.msra.mxu0 0.0
    %486 = vmatprep.subr.mxu0 0.0
    %487 = vmatpush1.msra.mxu0 0.0
    %488 = vmatprep.subr.mxu0 0.0
    %489 = vmatpush1.msra.mxu0 0.0
    %490 = vmatprep.subr.mxu0 0.0
    %491 = vmatpush1.msra.mxu0 0.0
    %492 = vmatprep.subr.mxu0 0.0
    %493 = vmatpush1.msra.mxu0 0.0
    %494 = vmatprep.subr.mxu0 0.0
    %495 = vmatpush1.msra.mxu0 0.0
    %496 = vmatprep.subr.mxu0 0.0
    %497 = vmatpush1.msra.mxu0 0.0
    %498 = vmatprep.subr.mxu0 0.0
    %499 = vmatpush1.msra.mxu0 0.0
    %500 = vmatprep.subr.mxu0 0.0
    %501 = vmatpush1.msra.mxu0 0.0
    %502 = vmatprep.subr.mxu0 0.0
    %503 = vmatpush1.msra.mxu0 0.0
    %504 = vmatprep.subr.mxu0 0.0
    %505 = vmatpush1.msra.mxu0 0.0
    %506 = vmatprep.subr.mxu0 0.0
    %507 = vmatpush1.msra.mxu0 0.0
    %508 = vmatprep.subr.mxu0 0.0
    %509 = vmatpush1.msra.mxu0 0.0
    %510 = vmatprep.subr.mxu0 0.0
    %511 = vmatpush1.msra.mxu0 0.0
    %512 = vmatprep.subr.mxu0 0.0
    %513 = vmatpush1.msra.mxu0 0.0
    %514 = vmatprep.subr.mxu0 0.0
    %515 = vmatpush1.msra.mxu0 0.0
    %516 = vmatprep.subr.mxu0 0.0
    %517 = vmatpush1.msra.mxu0 0.0
    %518 = vmatprep.mubr.f32.mxu0 0.0
    %519 = vmatmul.mubr.f32.gmra.mrb[0].mxu0 %v452
    %v520 = vpop.f32.mrb[0].mxu0
    %v521 = vadd.f32 0.0, %v520
    %v522 = vpop.f32.mrb[0].mxu0
    %523 = vdwg.mxu0
    %v525 = vrot.slane %v521, 6
    %v526 = vrot.slane %v521, 7
    %v529 = vadd.f32 %v160, %v525
    %v530 = vadd.f32 %v165, %v526
    %v531 = vxor.u32 %v529, 2147483648
    %v532 = vxor.u32 %v530, 2147483648
    %v533 = vmul.f32 %v531, 1.442695
    %v534 = vpow.pop %v533
    %v535 = vmul.f32 %v532, 1.442695
    %v536 = vpow.pop %v535
    %v537 = vadd.f32 %v534, 1.0
    %v538 = vadd.f32 %v536, 1.0
    %v539 = vrcp.pop %v537
    %v540 = vmul.f32 1.0, %v539
    %v541 = vrcp.pop %v538
    %v542 = vmul.f32 1.0, %v541
    %v543 = vtanh.pop %v529
    %v544 = vtanh.pop %v530
    %v547 = vrot.slane %v424, 7
    %v548 = vrot.slane %v425, 7
    %v551 = vmul.f32 %v540, %v547
    %v552 = vmul.f32 %v542, %v548
    %555 = vrot.lane.b32.xlu0 %v543, 64
    %v556 = vpop.permute.xlu0 %555
    %557 = vrot.lane.b32.xlu0 %v544, 64
    %v558 = vpop.permute.xlu0 %557
    %v561 = vmul.f32 %v540, %v556
    %v562 = vmul.f32 %v542, %v558
    %565 = vrot.lane.b32.xlu0 %v561, 32
    %v566 = vpop.permute.xlu0 %565
    %567 = vrot.lane.b32.xlu0 %v562, 32
    %v568 = vpop.permute.xlu0 %567
    %v571 = vadd.f32 %v551, %v566
    %v572 = vadd.f32 %v552, %v568
    %v573 = vtanh.pop %v571
    %v574 = vtanh.pop %v572
    %577 = vrot.lane.b32.xlu0 %v573, 64
    %v578 = vpop.permute.xlu0 %577
    %579 = vrot.lane.b32.xlu0 %v574, 64
    %v580 = vpop.permute.xlu0 %579
    %v583 = vmul.f32 %v540, %v578
    %v584 = vmul.f32 %v542, %v580
    %v587 = vrot.slane %v584, 7
    %vm588 = vcmask 1043459
    %v589 = vsel %vm588, %v587, %v583
    %590 = vrot.lane.b32.xlu0 %v589, 32
    %v591 = vpop.permute.xlu0 %590
    %vm593 = vcmask 257026
    %594 = vst.msk [vmem:[#allocation2 + $0x2] sm:$0xc] %vm593, %v591
    %v595 = vrot.slane %v583, 2
    %v596 = vrot.slane %v584, 1
    %v597 = vsel %vm299, %v596, %v595
    %598 = vrot.lane.b32.xlu0 %v597, 32
    %v599 = vpop.permute.xlu0 %598
    %v600 = vsel %vm168, %v599, 0
    %602 = vmatprep.subr.mxu0 0.0
    %603 = vmatpush1.msra.mxu0 %v69
    %604 = vmatprep.subr.mxu0 0.0
    %605 = vmatpush1.msra.mxu0 %v70
    %606 = vmatprep.subr.mxu0 0.0
    %607 = vmatpush1.msra.mxu0 %v71
    %608 = vmatprep.subr.mxu0 0.0
    %609 = vmatpush1.msra.mxu0 %v72
    %610 = vmatprep.subr.mxu0 0.0
    %611 = vmatpush1.msra.mxu0 0.0
    %612 = vmatprep.subr.mxu0 0.0
    %613 = vmatpush1.msra.mxu0 0.0
    %614 = vmatprep.subr.mxu0 0.0
    %615 = vmatpush1.msra.mxu0 0.0
    %616 = vmatprep.subr.mxu0 0.0
    %617 = vmatpush1.msra.mxu0 0.0
    %618 = vmatprep.subr.mxu0 0.0
    %619 = vmatpush1.msra.mxu0 0.0
    %620 = vmatprep.subr.mxu0 0.0
    %621 = vmatpush1.msra.mxu0 0.0
    %622 = vmatprep.subr.mxu0 0.0
    %623 = vmatpush1.msra.mxu0 0.0
    %624 = vmatprep.subr.mxu0 0.0
    %625 = vmatpush1.msra.mxu0 0.0
    %626 = vmatprep.subr.mxu0 0.0
    %627 = vmatpush1.msra.mxu0 0.0
    %628 = vmatprep.subr.mxu0 0.0
    %629 = vmatpush1.msra.mxu0 0.0
    %630 = vmatprep.subr.mxu0 0.0
    %631 = vmatpush1.msra.mxu0 0.0
    %632 = vmatprep.subr.mxu0 0.0
    %633 = vmatpush1.msra.mxu0 0.0
    %634 = vmatprep.subr.mxu0 0.0
    %635 = vmatpush1.msra.mxu0 0.0
    %636 = vmatprep.subr.mxu0 0.0
    %637 = vmatpush1.msra.mxu0 0.0
    %638 = vmatprep.subr.mxu0 0.0
    %639 = vmatpush1.msra.mxu0 0.0
    %640 = vmatprep.subr.mxu0 0.0
    %641 = vmatpush1.msra.mxu0 0.0
    %642 = vmatprep.subr.mxu0 0.0
    %643 = vmatpush1.msra.mxu0 0.0
    %644 = vmatprep.subr.mxu0 0.0
    %645 = vmatpush1.msra.mxu0 0.0
    %646 = vmatprep.subr.mxu0 0.0
    %647 = vmatpush1.msra.mxu0 0.0
    %648 = vmatprep.subr.mxu0 0.0
    %649 = vmatpush1.msra.mxu0 0.0
    %650 = vmatprep.subr.mxu0 0.0
    %651 = vmatpush1.msra.mxu0 0.0
    %652 = vmatprep.subr.mxu0 0.0
    %653 = vmatpush1.msra.mxu0 0.0
    %654 = vmatprep.subr.mxu0 0.0
    %655 = vmatpush1.msra.mxu0 0.0
    %656 = vmatprep.subr.mxu0 0.0
    %657 = vmatpush1.msra.mxu0 0.0
    %658 = vmatprep.subr.mxu0 0.0
    %659 = vmatpush1.msra.mxu0 0.0
    %660 = vmatprep.subr.mxu0 0.0
    %661 = vmatpush1.msra.mxu0 0.0
    %662 = vmatprep.subr.mxu0 0.0
    %663 = vmatpush1.msra.mxu0 0.0
    %664 = vmatprep.subr.mxu0 0.0
    %665 = vmatpush1.msra.mxu0 0.0
    %666 = vmatprep.mubr.f32.mxu0 0.0
    %667 = vmatmul.mubr.f32.gmra.mrb[0].mxu0 %v600
    %v668 = vpop.f32.mrb[0].mxu0
    %v669 = vadd.f32 0.0, %v668
    %v670 = vpop.f32.mrb[0].mxu0
    %671 = vdwg.mxu0
    %v673 = vrot.slane %v669, 5
    %v674 = vrot.slane %v669, 6
    %v677 = vadd.f32 %v160, %v673
    %v678 = vadd.f32 %v165, %v674
    %v679 = vxor.u32 %v677, 2147483648
    %v680 = vxor.u32 %v678, 2147483648
    %v681 = vmul.f32 %v679, 1.442695
    %v682 = vpow.pop %v681
    %v683 = vmul.f32 %v680, 1.442695
    %v684 = vpow.pop %v683
    %v685 = vadd.f32 %v682, 1.0
    %v686 = vadd.f32 %v684, 1.0
    %v687 = vrcp.pop %v685
    %v688 = vmul.f32 1.0, %v687
    %v689 = vrcp.pop %v686
    %v690 = vmul.f32 1.0, %v689
    %v691 = vtanh.pop %v677
    %v692 = vtanh.pop %v678
    %v695 = vrot.slane %v571, 7
    %v696 = vrot.slane %v572, 7
    %v699 = vmul.f32 %v688, %v695
    %v700 = vmul.f32 %v690, %v696
    %703 = vrot.lane.b32.xlu0 %v691, 64
    %v704 = vpop.permute.xlu0 %703
    %705 = vrot.lane.b32.xlu0 %v692, 64
    %v706 = vpop.permute.xlu0 %705
    %v709 = vmul.f32 %v688, %v704
    %v710 = vmul.f32 %v690, %v706
    %713 = vrot.lane.b32.xlu0 %v709, 32
    %v714 = vpop.permute.xlu0 %713
    %715 = vrot.lane.b32.xlu0 %v710, 32
    %v716 = vpop.permute.xlu0 %715
    %v719 = vadd.f32 %v699, %v714
    %v720 = vadd.f32 %v700, %v716
    %v721 = vtanh.pop %v719
    %v722 = vtanh.pop %v720
    %725 = vrot.lane.b32.xlu0 %v721, 64
    %v726 = vpop.permute.xlu0 %725
    %727 = vrot.lane.b32.xlu0 %v722, 64
    %v728 = vpop.permute.xlu0 %727
    %v731 = vmul.f32 %v688, %v726
    %v732 = vmul.f32 %v690, %v728
    %v735 = vrot.slane %v732, 7
    %vm736 = vcmask 1044484
    %v737 = vsel %vm736, %v735, %v731
    %738 = vrot.lane.b32.xlu0 %v737, 32
    %v739 = vpop.permute.xlu0 %738
    %vm741 = vcmask 258051
    %742 = vst.msk [vmem:[#allocation2 + $0x3] sm:$0x18] %vm741, %v739
    %v743 = vrot.slane %v731, 3
    %v744 = vrot.slane %v732, 2
    %v745 = vsel %vm299, %v744, %v743
    %746 = vrot.lane.b32.xlu0 %v745, 32
    %v747 = vpop.permute.xlu0 %746
    %v748 = vsel %vm168, %v747, 0
    %750 = vmatprep.subr.mxu0 0.0
    %751 = vmatpush1.msra.mxu0 %v69
    %752 = vmatprep.subr.mxu0 0.0
    %753 = vmatpush1.msra.mxu0 %v70
    %754 = vmatprep.subr.mxu0 0.0
    %755 = vmatpush1.msra.mxu0 %v71
    %756 = vmatprep.subr.mxu0 0.0
    %757 = vmatpush1.msra.mxu0 %v72
    %758 = vmatprep.subr.mxu0 0.0
    %759 = vmatpush1.msra.mxu0 0.0
    %760 = vmatprep.subr.mxu0 0.0
    %761 = vmatpush1.msra.mxu0 0.0
    %762 = vmatprep.subr.mxu0 0.0
    %763 = vmatpush1.msra.mxu0 0.0
    %764 = vmatprep.subr.mxu0 0.0
    %765 = vmatpush1.msra.mxu0 0.0
    %766 = vmatprep.subr.mxu0 0.0
    %767 = vmatpush1.msra.mxu0 0.0
    %768 = vmatprep.subr.mxu0 0.0
    %769 = vmatpush1.msra.mxu0 0.0
    %770 = vmatprep.subr.mxu0 0.0
    %771 = vmatpush1.msra.mxu0 0.0
    %772 = vmatprep.subr.mxu0 0.0
    %773 = vmatpush1.msra.mxu0 0.0
    %774 = vmatprep.subr.mxu0 0.0
    %775 = vmatpush1.msra.mxu0 0.0
    %776 = vmatprep.subr.mxu0 0.0
    %777 = vmatpush1.msra.mxu0 0.0
    %778 = vmatprep.subr.mxu0 0.0
    %779 = vmatpush1.msra.mxu0 0.0
    %780 = vmatprep.subr.mxu0 0.0
    %781 = vmatpush1.msra.mxu0 0.0
    %782 = vmatprep.subr.mxu0 0.0
    %783 = vmatpush1.msra.mxu0 0.0
    %784 = vmatprep.subr.mxu0 0.0
    %785 = vmatpush1.msra.mxu0 0.0
    %786 = vmatprep.subr.mxu0 0.0
    %787 = vmatpush1.msra.mxu0 0.0
    %788 = vmatprep.subr.mxu0 0.0
    %789 = vmatpush1.msra.mxu0 0.0
    %790 = vmatprep.subr.mxu0 0.0
    %791 = vmatpush1.msra.mxu0 0.0
    %792 = vmatprep.subr.mxu0 0.0
    %793 = vmatpush1.msra.mxu0 0.0
    %794 = vmatprep.subr.mxu0 0.0
    %795 = vmatpush1.msra.mxu0 0.0
    %796 = vmatprep.subr.mxu0 0.0
    %797 = vmatpush1.msra.mxu0 0.0
    %798 = vmatprep.subr.mxu0 0.0
    %799 = vmatpush1.msra.mxu0 0.0
    %800 = vmatprep.subr.mxu0 0.0
    %801 = vmatpush1.msra.mxu0 0.0
    %802 = vmatprep.subr.mxu0 0.0
    %803 = vmatpush1.msra.mxu0 0.0
    %804 = vmatprep.subr.mxu0 0.0
    %805 = vmatpush1.msra.mxu0 0.0
    %806 = vmatprep.subr.mxu0 0.0
    %807 = vmatpush1.msra.mxu0 0.0
    %808 = vmatprep.subr.mxu0 0.0
    %809 = vmatpush1.msra.mxu0 0.0
    %810 = vmatprep.subr.mxu0 0.0
    %811 = vmatpush1.msra.mxu0 0.0
    %812 = vmatprep.subr.mxu0 0.0
    %813 = vmatpush1.msra.mxu0 0.0
    %814 = vmatprep.mubr.f32.mxu0 0.0
    %815 = vmatmul.mubr.f32.gmra.mrb[0].mxu0 %v748
    %v816 = vpop.f32.mrb[0].mxu0
    %v817 = vadd.f32 0.0, %v816
    %v818 = vpop.f32.mrb[0].mxu0
    %819 = vdwg.mxu0
    %v821 = vrot.slane %v817, 4
    %v822 = vrot.slane %v817, 5
    %v825 = vadd.f32 %v160, %v821
    %v826 = vadd.f32 %v165, %v822
    %v827 = vxor.u32 %v825, 2147483648
    %v828 = vxor.u32 %v826, 2147483648
    %v829 = vmul.f32 %v827, 1.442695
    %v830 = vpow.pop %v829
    %v831 = vmul.f32 %v828, 1.442695
    %v832 = vpow.pop %v831
    %v833 = vadd.f32 %v830, 1.0
    %v834 = vadd.f32 %v832, 1.0
    %v835 = vrcp.pop %v833
    %v836 = vmul.f32 1.0, %v835
    %v837 = vrcp.pop %v834
    %v838 = vmul.f32 1.0, %v837
    %v839 = vtanh.pop %v825
    %v840 = vtanh.pop %v826
    %v843 = vrot.slane %v719, 7
    %v844 = vrot.slane %v720, 7
    %v847 = vmul.f32 %v836, %v843
    %v848 = vmul.f32 %v838, %v844
    %851 = vrot.lane.b32.xlu0 %v839, 64
    %v852 = vpop.permute.xlu0 %851
    %853 = vrot.lane.b32.xlu0 %v840, 64
    %v854 = vpop.permute.xlu0 %853
    %v857 = vmul.f32 %v836, %v852
    %v858 = vmul.f32 %v838, %v854
    %861 = vrot.lane.b32.xlu0 %v857, 32
    %v862 = vpop.permute.xlu0 %861
    %863 = vrot.lane.b32.xlu0 %v858, 32
    %v864 = vpop.permute.xlu0 %863
    %v867 = vadd.f32 %v847, %v862
    %v868 = vadd.f32 %v848, %v864
    %v869 = vtanh.pop %v867
    %v870 = vtanh.pop %v868
    %873 = vrot.lane.b32.xlu0 %v869, 64
    %v874 = vpop.permute.xlu0 %873
    %875 = vrot.lane.b32.xlu0 %v870, 64
    %v876 = vpop.permute.xlu0 %875
    %v879 = vmul.f32 %v836, %v874
    %v880 = vmul.f32 %v838, %v876
    %v883 = vrot.slane %v880, 7
    %vm884 = vcmask 1045509
    %v885 = vsel %vm884, %v883, %v879
    %886 = vrot.lane.b32.xlu0 %v885, 32
    %v887 = vpop.permute.xlu0 %886
    %vm889 = vcmask 259076
    %890 = vst.msk [vmem:[#allocation2 + $0x4] sm:$0x30] %vm889, %v887
    %v891 = vrot.slane %v879, 4
    %v892 = vrot.slane %v880, 3
    %v893 = vsel %vm299, %v892, %v891
    %894 = vrot.lane.b32.xlu0 %v893, 32
    %v895 = vpop.permute.xlu0 %894
    %v896 = vsel %vm168, %v895, 0
    %898 = vmatprep.subr.mxu0 0.0
    %899 = vmatpush1.msra.mxu0 %v69
    %900 = vmatprep.subr.mxu0 0.0
    %901 = vmatpush1.msra.mxu0 %v70
    %902 = vmatprep.subr.mxu0 0.0
    %903 = vmatpush1.msra.mxu0 %v71
    %904 = vmatprep.subr.mxu0 0.0
    %905 = vmatpush1.msra.mxu0 %v72
    %906 = vmatprep.subr.mxu0 0.0
    %907 = vmatpush1.msra.mxu0 0.0
    %908 = vmatprep.subr.mxu0 0.0
    %909 = vmatpush1.msra.mxu0 0.0
    %910 = vmatprep.subr.mxu0 0.0
    %911 = vmatpush1.msra.mxu0 0.0
    %912 = vmatprep.subr.mxu0 0.0
    %913 = vmatpush1.msra.mxu0 0.0
    %914 = vmatprep.subr.mxu0 0.0
    %915 = vmatpush1.msra.mxu0 0.0
    %916 = vmatprep.subr.mxu0 0.0
    %917 = vmatpush1.msra.mxu0 0.0
    %918 = vmatprep.subr.mxu0 0.0
    %919 = vmatpush1.msra.mxu0 0.0
    %920 = vmatprep.subr.mxu0 0.0
    %921 = vmatpush1.msra.mxu0 0.0
    %922 = vmatprep.subr.mxu0 0.0
    %923 = vmatpush1.msra.mxu0 0.0
    %924 = vmatprep.subr.mxu0 0.0
    %925 = vmatpush1.msra.mxu0 0.0
    %926 = vmatprep.subr.mxu0 0.0
    %927 = vmatpush1.msra.mxu0 0.0
    %928 = vmatprep.subr.mxu0 0.0
    %929 = vmatpush1.msra.mxu0 0.0
    %930 = vmatprep.subr.mxu0 0.0
    %931 = vmatpush1.msra.mxu0 0.0
    %932 = vmatprep.subr.mxu0 0.0
    %933 = vmatpush1.msra.mxu0 0.0
    %934 = vmatprep.subr.mxu0 0.0
    %935 = vmatpush1.msra.mxu0 0.0
    %936 = vmatprep.subr.mxu0 0.0
    %937 = vmatpush1.msra.mxu0 0.0
    %938 = vmatprep.subr.mxu0 0.0
    %939 = vmatpush1.msra.mxu0 0.0
    %940 = vmatprep.subr.mxu0 0.0
    %941 = vmatpush1.msra.mxu0 0.0
    %942 = vmatprep.subr.mxu0 0.0
    %943 = vmatpush1.msra.mxu0 0.0
    %944 = vmatprep.subr.mxu0 0.0
    %945 = vmatpush1.msra.mxu0 0.0
    %946 = vmatprep.subr.mxu0 0.0
    %947 = vmatpush1.msra.mxu0 0.0
    %948 = vmatprep.subr.mxu0 0.0
    %949 = vmatpush1.msra.mxu0 0.0
    %950 = vmatprep.subr.mxu0 0.0
    %951 = vmatpush1.msra.mxu0 0.0
    %952 = vmatprep.subr.mxu0 0.0
    %953 = vmatpush1.msra.mxu0 0.0
    %954 = vmatprep.subr.mxu0 0.0
    %955 = vmatpush1.msra.mxu0 0.0
    %956 = vmatprep.subr.mxu0 0.0
    %957 = vmatpush1.msra.mxu0 0.0
    %958 = vmatprep.subr.mxu0 0.0
    %959 = vmatpush1.msra.mxu0 0.0
    %960 = vmatprep.subr.mxu0 0.0
    %961 = vmatpush1.msra.mxu0 0.0
    %962 = vmatprep.mubr.f32.mxu0 0.0
    %963 = vmatmul.mubr.f32.gmra.mrb[0].mxu0 %v896
    %v964 = vpop.f32.mrb[0].mxu0
    %v965 = vadd.f32 0.0, %v964
    %v966 = vpop.f32.mrb[0].mxu0
    %967 = vdwg.mxu0
    %v969 = vrot.slane %v965, 3
    %v970 = vrot.slane %v965, 4
    %v973 = vadd.f32 %v160, %v969
    %v974 = vadd.f32 %v165, %v970
    %v975 = vxor.u32 %v973, 2147483648
    %v976 = vxor.u32 %v974, 2147483648
    %v977 = vmul.f32 %v975, 1.442695
    %v978 = vpow.pop %v977
    %v979 = vmul.f32 %v976, 1.442695
    %v980 = vpow.pop %v979
    %v981 = vadd.f32 %v978, 1.0
    %v982 = vadd.f32 %v980, 1.0
    %v983 = vrcp.pop %v981
    %v984 = vmul.f32 1.0, %v983
    %v985 = vrcp.pop %v982
    %v986 = vmul.f32 1.0, %v985
    %v987 = vtanh.pop %v973
    %v988 = vtanh.pop %v974
    %v991 = vrot.slane %v867, 7
    %v992 = vrot.slane %v868, 7
    %v995 = vmul.f32 %v984, %v991
    %v996 = vmul.f32 %v986, %v992
    %999 = vrot.lane.b32.xlu0 %v987, 64
    %v1000 = vpop.permute.xlu0 %999
    %1001 = vrot.lane.b32.xlu0 %v988, 64
    %v1002 = vpop.permute.xlu0 %1001
    %v1005 = vmul.f32 %v984, %v1000
    %v1006 = vmul.f32 %v986, %v1002
    %1009 = vrot.lane.b32.xlu0 %v1005, 32
    %v1010 = vpop.permute.xlu0 %1009
    %1011 = vrot.lane.b32.xlu0 %v1006, 32
    %v1012 = vpop.permute.xlu0 %1011
    %v1015 = vadd.f32 %v995, %v1010
    %v1016 = vadd.f32 %v996, %v1012
    %v1017 = vtanh.pop %v1015
    %v1018 = vtanh.pop %v1016
    %1021 = vrot.lane.b32.xlu0 %v1017, 64
    %v1022 = vpop.permute.xlu0 %1021
    %1023 = vrot.lane.b32.xlu0 %v1018, 64
    %v1024 = vpop.permute.xlu0 %1023
    %v1027 = vmul.f32 %v984, %v1022
    %v1028 = vmul.f32 %v986, %v1024
    %v1031 = vrot.slane %v1028, 7
    %vm1032 = vcmask 1046534
    %v1033 = vsel %vm1032, %v1031, %v1027
    %1034 = vrot.lane.b32.xlu0 %v1033, 32
    %v1035 = vpop.permute.xlu0 %1034
    %vm1037 = vcmask 260101
    %1038 = vst.msk [vmem:[#allocation2 + $0x5] sm:$0x60] %vm1037, %v1035
    %v1039 = vrot.slane %v1027, 5
    %v1040 = vrot.slane %v1028, 4
    %v1041 = vsel %vm299, %v1040, %v1039
    %1042 = vrot.lane.b32.xlu0 %v1041, 32
    %v1043 = vpop.permute.xlu0 %1042
    %v1044 = vsel %vm168, %v1043, 0
    %1046 = vmatprep.subr.mxu0 0.0
    %1047 = vmatpush1.msra.mxu0 %v69
    %1048 = vmatprep.subr.mxu0 0.0
    %1049 = vmatpush1.msra.mxu0 %v70
    %1050 = vmatprep.subr.mxu0 0.0
    %1051 = vmatpush1.msra.mxu0 %v71
    %1052 = vmatprep.subr.mxu0 0.0
    %1053 = vmatpush1.msra.mxu0 %v72
    %1054 = vmatprep.subr.mxu0 0.0
    %1055 = vmatpush1.msra.mxu0 0.0
    %1056 = vmatprep.subr.mxu0 0.0
    %1057 = vmatpush1.msra.mxu0 0.0
    %1058 = vmatprep.subr.mxu0 0.0
    %1059 = vmatpush1.msra.mxu0 0.0
    %1060 = vmatprep.subr.mxu0 0.0
    %1061 = vmatpush1.msra.mxu0 0.0
    %1062 = vmatprep.subr.mxu0 0.0
    %1063 = vmatpush1.msra.mxu0 0.0
    %1064 = vmatprep.subr.mxu0 0.0
    %1065 = vmatpush1.msra.mxu0 0.0
    %1066 = vmatprep.subr.mxu0 0.0
    %1067 = vmatpush1.msra.mxu0 0.0
    %1068 = vmatprep.subr.mxu0 0.0
    %1069 = vmatpush1.msra.mxu0 0.0
    %1070 = vmatprep.subr.mxu0 0.0
    %1071 = vmatpush1.msra.mxu0 0.0
    %1072 = vmatprep.subr.mxu0 0.0
    %1073 = vmatpush1.msra.mxu0 0.0
    %1074 = vmatprep.subr.mxu0 0.0
    %1075 = vmatpush1.msra.mxu0 0.0
    %1076 = vmatprep.subr.mxu0 0.0
    %1077 = vmatpush1.msra.mxu0 0.0
    %1078 = vmatprep.subr.mxu0 0.0
    %1079 = vmatpush1.msra.mxu0 0.0
    %1080 = vmatprep.subr.mxu0 0.0
    %1081 = vmatpush1.msra.mxu0 0.0
    %1082 = vmatprep.subr.mxu0 0.0
    %1083 = vmatpush1.msra.mxu0 0.0
    %1084 = vmatprep.subr.mxu0 0.0
    %1085 = vmatpush1.msra.mxu0 0.0
    %1086 = vmatprep.subr.mxu0 0.0
    %1087 = vmatpush1.msra.mxu0 0.0
    %1088 = vmatprep.subr.mxu0 0.0
    %1089 = vmatpush1.msra.mxu0 0.0
    %1090 = vmatprep.subr.mxu0 0.0
    %1091 = vmatpush1.msra.mxu0 0.0
    %1092 = vmatprep.subr.mxu0 0.0
    %1093 = vmatpush1.msra.mxu0 0.0
    %1094 = vmatprep.subr.mxu0 0.0
    %1095 = vmatpush1.msra.mxu0 0.0
    %1096 = vmatprep.subr.mxu0 0.0
    %1097 = vmatpush1.msra.mxu0 0.0
    %1098 = vmatprep.subr.mxu0 0.0
    %1099 = vmatpush1.msra.mxu0 0.0
    %1100 = vmatprep.subr.mxu0 0.0
    %1101 = vmatpush1.msra.mxu0 0.0
    %1102 = vmatprep.subr.mxu0 0.0
    %1103 = vmatpush1.msra.mxu0 0.0
    %1104 = vmatprep.subr.mxu0 0.0
    %1105 = vmatpush1.msra.mxu0 0.0
    %1106 = vmatprep.subr.mxu0 0.0
    %1107 = vmatpush1.msra.mxu0 0.0
    %1108 = vmatprep.subr.mxu0 0.0
    %1109 = vmatpush1.msra.mxu0 0.0
    %1110 = vmatprep.mubr.f32.mxu0 0.0
    %1111 = vmatmul.mubr.f32.gmra.mrb[0].mxu0 %v1044
    %v1112 = vpop.f32.mrb[0].mxu0
    %v1113 = vadd.f32 0.0, %v1112
    %v1114 = vpop.f32.mrb[0].mxu0
    %1115 = vdwg.mxu0
    %v1117 = vrot.slane %v1113, 2
    %v1118 = vrot.slane %v1113, 3
    %v1121 = vadd.f32 %v160, %v1117
    %v1122 = vadd.f32 %v165, %v1118
    %v1123 = vxor.u32 %v1121, 2147483648
    %v1124 = vxor.u32 %v1122, 2147483648
    %v1125 = vmul.f32 %v1123, 1.442695
    %v1126 = vpow.pop %v1125
    %v1127 = vmul.f32 %v1124, 1.442695
    %v1128 = vpow.pop %v1127
    %v1129 = vadd.f32 %v1126, 1.0
    %v1130 = vadd.f32 %v1128, 1.0
    %v1131 = vrcp.pop %v1129
    %v1132 = vmul.f32 1.0, %v1131
    %v1133 = vrcp.pop %v1130
    %v1134 = vmul.f32 1.0, %v1133
    %v1135 = vtanh.pop %v1121
    %v1136 = vtanh.pop %v1122
    %v1139 = vrot.slane %v1015, 7
    %v1140 = vrot.slane %v1016, 7
    %v1143 = vmul.f32 %v1132, %v1139
    %v1144 = vmul.f32 %v1134, %v1140
    %1147 = vrot.lane.b32.xlu0 %v1135, 64
    %v1148 = vpop.permute.xlu0 %1147
    %1149 = vrot.lane.b32.xlu0 %v1136, 64
    %v1150 = vpop.permute.xlu0 %1149
    %v1153 = vmul.f32 %v1132, %v1148
    %v1154 = vmul.f32 %v1134, %v1150
    %1157 = vrot.lane.b32.xlu0 %v1153, 32
    %v1158 = vpop.permute.xlu0 %1157
    %1159 = vrot.lane.b32.xlu0 %v1154, 32
    %v1160 = vpop.permute.xlu0 %1159
    %v1163 = vadd.f32 %v1143, %v1158
    %v1164 = vadd.f32 %v1144, %v1160
    %v1165 = vtanh.pop %v1163
    %v1166 = vtanh.pop %v1164
    %1169 = vrot.lane.b32.xlu0 %v1165, 64
    %v1170 = vpop.permute.xlu0 %1169
    %1171 = vrot.lane.b32.xlu0 %v1166, 64
    %v1172 = vpop.permute.xlu0 %1171
    %v1175 = vmul.f32 %v1132, %v1170
    %v1176 = vmul.f32 %v1134, %v1172
    %v1179 = vrot.slane %v1176, 7
    %vm1180 = vcmask 1047559
    %v1181 = vsel %vm1180, %v1179, %v1175
    %1182 = vrot.lane.b32.xlu0 %v1181, 32
    %v1183 = vpop.permute.xlu0 %1182
    %vm1185 = vcmask 261126
    %1186 = vst.msk [vmem:[#allocation2 + $0x6] sm:$0xc0] %vm1185, %v1183
    %v1187 = vrot.slane %v1175, 6
    %v1188 = vrot.slane %v1176, 5
    %v1189 = vsel %vm299, %v1188, %v1187
    %1190 = vrot.lane.b32.xlu0 %v1189, 32
    %v1191 = vpop.permute.xlu0 %1190
    %v1192 = vsel %vm168, %v1191, 0
    %1194 = vmatprep.subr.mxu0 0.0
    %1195 = vmatpush1.msra.mxu0 %v69
    %1196 = vmatprep.subr.mxu0 0.0
    %1197 = vmatpush1.msra.mxu0 %v70
    %1198 = vmatprep.subr.mxu0 0.0
    %1199 = vmatpush1.msra.mxu0 %v71
    %1200 = vmatprep.subr.mxu0 0.0
    %1201 = vmatpush1.msra.mxu0 %v72
    %1202 = vmatprep.subr.mxu0 0.0
    %1203 = vmatpush1.msra.mxu0 0.0
    %1204 = vmatprep.subr.mxu0 0.0
    %1205 = vmatpush1.msra.mxu0 0.0
    %1206 = vmatprep.subr.mxu0 0.0
    %1207 = vmatpush1.msra.mxu0 0.0
    %1208 = vmatprep.subr.mxu0 0.0
    %1209 = vmatpush1.msra.mxu0 0.0
    %1210 = vmatprep.subr.mxu0 0.0
    %1211 = vmatpush1.msra.mxu0 0.0
    %1212 = vmatprep.subr.mxu0 0.0
    %1213 = vmatpush1.msra.mxu0 0.0
    %1214 = vmatprep.subr.mxu0 0.0
    %1215 = vmatpush1.msra.mxu0 0.0
    %1216 = vmatprep.subr.mxu0 0.0
    %1217 = vmatpush1.msra.mxu0 0.0
    %1218 = vmatprep.subr.mxu0 0.0
    %1219 = vmatpush1.msra.mxu0 0.0
    %1220 = vmatprep.subr.mxu0 0.0
    %1221 = vmatpush1.msra.mxu0 0.0
    %1222 = vmatprep.subr.mxu0 0.0
    %1223 = vmatpush1.msra.mxu0 0.0
    %1224 = vmatprep.subr.mxu0 0.0
    %1225 = vmatpush1.msra.mxu0 0.0
    %1226 = vmatprep.subr.mxu0 0.0
    %1227 = vmatpush1.msra.mxu0 0.0
    %1228 = vmatprep.subr.mxu0 0.0
    %1229 = vmatpush1.msra.mxu0 0.0
    %1230 = vmatprep.subr.mxu0 0.0
    %1231 = vmatpush1.msra.mxu0 0.0
    %1232 = vmatprep.subr.mxu0 0.0
    %1233 = vmatpush1.msra.mxu0 0.0
    %1234 = vmatprep.subr.mxu0 0.0
    %1235 = vmatpush1.msra.mxu0 0.0
    %1236 = vmatprep.subr.mxu0 0.0
    %1237 = vmatpush1.msra.mxu0 0.0
    %1238 = vmatprep.subr.mxu0 0.0
    %1239 = vmatpush1.msra.mxu0 0.0
    %1240 = vmatprep.subr.mxu0 0.0
    %1241 = vmatpush1.msra.mxu0 0.0
    %1242 = vmatprep.subr.mxu0 0.0
    %1243 = vmatpush1.msra.mxu0 0.0
    %1244 = vmatprep.subr.mxu0 0.0
    %1245 = vmatpush1.msra.mxu0 0.0
    %1246 = vmatprep.subr.mxu0 0.0
    %1247 = vmatpush1.msra.mxu0 0.0
    %1248 = vmatprep.subr.mxu0 0.0
    %1249 = vmatpush1.msra.mxu0 0.0
    %1250 = vmatprep.subr.mxu0 0.0
    %1251 = vmatpush1.msra.mxu0 0.0
    %1252 = vmatprep.subr.mxu0 0.0
    %1253 = vmatpush1.msra.mxu0 0.0
    %1254 = vmatprep.subr.mxu0 0.0
    %1255 = vmatpush1.msra.mxu0 0.0
    %1256 = vmatprep.subr.mxu0 0.0
    %1257 = vmatpush1.msra.mxu0 0.0
    %1258 = vmatprep.mubr.f32.mxu0 0.0
    %1259 = vmatmul.mubr.f32.gmra.mrb[0].mxu0 %v1192
    %v1260 = vpop.f32.mrb[0].mxu0
    %v1261 = vadd.f32 0.0, %v1260
    %v1262 = vpop.f32.mrb[0].mxu0
    %1263 = vdwg.mxu0
    %v1265 = vrot.slane %v1261, 1
    %v1266 = vrot.slane %v1261, 2
    %v1269 = vadd.f32 %v160, %v1265
    %v1270 = vadd.f32 %v165, %v1266
    %v1271 = vxor.u32 %v1269, 2147483648
    %v1272 = vxor.u32 %v1270, 2147483648
    %v1273 = vmul.f32 %v1271, 1.442695
    %v1274 = vpow.pop %v1273
    %v1275 = vmul.f32 %v1272, 1.442695
    %v1276 = vpow.pop %v1275
    %v1277 = vadd.f32 %v1274, 1.0
    %v1278 = vadd.f32 %v1276, 1.0
    %v1279 = vrcp.pop %v1277
    %v1280 = vmul.f32 1.0, %v1279
    %v1281 = vrcp.pop %v1278
    %v1282 = vmul.f32 1.0, %v1281
    %v1283 = vtanh.pop %v1269
    %v1284 = vtanh.pop %v1270
    %v1287 = vrot.slane %v1163, 7
    %v1288 = vrot.slane %v1164, 7
    %v1291 = vmul.f32 %v1280, %v1287
    %v1292 = vmul.f32 %v1282, %v1288
    %1295 = vrot.lane.b32.xlu0 %v1283, 64
    %v1296 = vpop.permute.xlu0 %1295
    %1297 = vrot.lane.b32.xlu0 %v1284, 64
    %v1298 = vpop.permute.xlu0 %1297
    %v1301 = vmul.f32 %v1280, %v1296
    %v1302 = vmul.f32 %v1282, %v1298
    %1305 = vrot.lane.b32.xlu0 %v1301, 32
    %v1306 = vpop.permute.xlu0 %1305
    %1307 = vrot.lane.b32.xlu0 %v1302, 32
    %v1308 = vpop.permute.xlu0 %1307
    %v1311 = vadd.f32 %v1291, %v1306
    %v1312 = vadd.f32 %v1292, %v1308
    %v1313 = vtanh.pop %v1311
    %v1314 = vtanh.pop %v1312
    %1317 = vrot.lane.b32.xlu0 %v1313, 64
    %v1318 = vpop.permute.xlu0 %1317
    %1319 = vrot.lane.b32.xlu0 %v1314, 64
    %v1320 = vpop.permute.xlu0 %1319
    %v1323 = vmul.f32 %v1280, %v1318
    %v1324 = vmul.f32 %v1282, %v1320
    %v1327 = vrot.slane %v1324, 7
    %1328 = vrot.lane.b32.xlu0 %v1323, 32
    %v1329 = vpop.permute.xlu0 %1328
    %1330 = vrot.lane.b32.xlu0 %v1327, 32
    %v1331 = vpop.permute.xlu0 %1330
    %vm1334 = vcmask 261127
    %1335 = vst.msk [vmem:[#allocation2 + $0x7] sm:$0x80] %vm1334, %v1329
    %vm1336 = vcmask 253952
    %1337 = vst.msk [vmem:[#allocation2 + $0xf] sm:$0x1] %vm1336, %v1331
    %v1338 = vld [vmem:[%s4] sm:$0xff]
    %v1339 = vld [vmem:[%s4 + $0x8] sm:$0xff]
    %v1340 = vld [vmem:[%s4 + $0x10] sm:$0xff]
    %v1341 = vld [vmem:[%s4 + $0x18] sm:$0xff]
    %v1342 = vld [vmem:[#allocation4] sm:$0xff]
    %v1343 = vld [vmem:[#allocation4 + $0x8] sm:$0xff]
    %v1344 = vld [vmem:[#allocation4 + $0x10] sm:$0xff]
    %v1345 = vld [vmem:[#allocation4 + $0x18] sm:$0xff]
    %v1346 = vld [vmem:[%s6] sm:$0x1]
    %v1347 = vld [vmem:[#allocation2] sm:$0xff]
    %v1348 = vld [vmem:[#allocation2 + $0x8] sm:$0xff]
    %v1350 = vlaneseq
    %v1351 = vshrl.u32 %v1350, 7
    %v1352 = vsub.s32 0, %v1351
    %v1353 = vrot.slane %v1346, %v1352
    %v1356 = vsel %vm168, %v1347, 0
    %v1359 = vsel %vm168, %v1348, 0
    %1361 = vmatprep.subr.mxu0 0.0
    %1362 = vmatpush1.msra.mxu0 %v1338
    %1363 = vmatprep.subr.mxu0 0.0
    %1364 = vmatpush1.msra.mxu0 %v1339
    %1365 = vmatprep.subr.mxu0 0.0
    %1366 = vmatpush1.msra.mxu0 %v1340
    %1367 = vmatprep.subr.mxu0 0.0
    %1368 = vmatpush1.msra.mxu0 %v1341
    %1369 = vmatprep.subr.mxu0 0.0
    %1370 = vmatpush1.msra.mxu0 0.0
    %1371 = vmatprep.subr.mxu0 0.0
    %1372 = vmatpush1.msra.mxu0 0.0
    %1373 = vmatprep.subr.mxu0 0.0
    %1374 = vmatpush1.msra.mxu0 0.0
    %1375 = vmatprep.subr.mxu0 0.0
    %1376 = vmatpush1.msra.mxu0 0.0
    %1377 = vmatprep.subr.mxu0 0.0
    %1378 = vmatpush1.msra.mxu0 0.0
    %1379 = vmatprep.subr.mxu0 0.0
    %1380 = vmatpush1.msra.mxu0 0.0
    %1381 = vmatprep.subr.mxu0 0.0
    %1382 = vmatpush1.msra.mxu0 0.0
    %1383 = vmatprep.subr.mxu0 0.0
    %1384 = vmatpush1.msra.mxu0 0.0
    %1385 = vmatprep.subr.mxu0 0.0
    %1386 = vmatpush1.msra.mxu0 0.0
    %1387 = vmatprep.subr.mxu0 0.0
    %1388 = vmatpush1.msra.mxu0 0.0
    %1389 = vmatprep.subr.mxu0 0.0
    %1390 = vmatpush1.msra.mxu0 0.0
    %1391 = vmatprep.subr.mxu0 0.0
    %1392 = vmatpush1.msra.mxu0 0.0
    %1393 = vmatprep.subr.mxu0 0.0
    %1394 = vmatpush1.msra.mxu0 0.0
    %1395 = vmatprep.subr.mxu0 0.0
    %1396 = vmatpush1.msra.mxu0 0.0
    %1397 = vmatprep.subr.mxu0 0.0
    %1398 = vmatpush1.msra.mxu0 0.0
    %1399 = vmatprep.subr.mxu0 0.0
    %1400 = vmatpush1.msra.mxu0 0.0
    %1401 = vmatprep.subr.mxu0 0.0
    %1402 = vmatpush1.msra.mxu0 0.0
    %1403 = vmatprep.subr.mxu0 0.0
    %1404 = vmatpush1.msra.mxu0 0.0
    %1405 = vmatprep.subr.mxu0 0.0
    %1406 = vmatpush1.msra.mxu0 0.0
    %1407 = vmatprep.subr.mxu0 0.0
    %1408 = vmatpush1.msra.mxu0 0.0
    %1409 = vmatprep.subr.mxu0 0.0
    %1410 = vmatpush1.msra.mxu0 0.0
    %1411 = vmatprep.subr.mxu0 0.0
    %1412 = vmatpush1.msra.mxu0 0.0
    %1413 = vmatprep.subr.mxu0 0.0
    %1414 = vmatpush1.msra.mxu0 0.0
    %1415 = vmatprep.subr.mxu0 0.0
    %1416 = vmatpush1.msra.mxu0 0.0
    %1417 = vmatprep.subr.mxu0 0.0
    %1418 = vmatpush1.msra.mxu0 0.0
    %1419 = vmatprep.subr.mxu0 0.0
    %1420 = vmatpush1.msra.mxu0 0.0
    %1421 = vmatprep.subr.mxu0 0.0
    %1422 = vmatpush1.msra.mxu0 0.0
    %1423 = vmatprep.subr.mxu0 0.0
    %1424 = vmatpush1.msra.mxu0 0.0
    %1425 = vmatprep.mubr.f32.mxu0 0.0
    %1426 = vmatmul.mubr.f32.gmra.mrb[0].mxu0 %v1356
    %v1427 = vpop.f32.mrb[0].mxu0
    %v1428 = vadd.f32 %v1353, %v1427
    %v1429 = vpop.f32.mrb[0].mxu0
    %1430 = vmatprep.mubr.f32.mxu0 0.0
    %1431 = vmatmul.mubr.f32.gmra.mrb[0].mxu0 %v1359
    %v1432 = vpop.f32.mrb[0].mxu0
    %v1433 = vadd.f32 %v1353, %v1432
    %v1434 = vpop.f32.mrb[0].mxu0
    %1435 = vdwg.mxu0
    %1436 = vmatprep.subr.mxu0 0.0
    %1437 = vmatpush1.msra.mxu0 %v1342
    %1438 = vmatprep.subr.mxu0 0.0
    %1439 = vmatpush1.msra.mxu0 %v1343
    %1440 = vmatprep.subr.mxu0 0.0
    %1441 = vmatpush1.msra.mxu0 %v1344
    %1442 = vmatprep.subr.mxu0 0.0
    %1443 = vmatpush1.msra.mxu0 %v1345
    %1444 = vmatprep.subr.mxu0 0.0
    %1445 = vmatpush1.msra.mxu0 0.0
    %1446 = vmatprep.subr.mxu0 0.0
    %1447 = vmatpush1.msra.mxu0 0.0
    %1448 = vmatprep.subr.mxu0 0.0
    %1449 = vmatpush1.msra.mxu0 0.0
    %1450 = vmatprep.subr.mxu0 0.0
    %1451 = vmatpush1.msra.mxu0 0.0
    %1452 = vmatprep.subr.mxu0 0.0
    %1453 = vmatpush1.msra.mxu0 0.0
    %1454 = vmatprep.subr.mxu0 0.0
    %1455 = vmatpush1.msra.mxu0 0.0
    %1456 = vmatprep.subr.mxu0 0.0
    %1457 = vmatpush1.msra.mxu0 0.0
    %1458 = vmatprep.subr.mxu0 0.0
    %1459 = vmatpush1.msra.mxu0 0.0
    %1460 = vmatprep.subr.mxu0 0.0
    %1461 = vmatpush1.msra.mxu0 0.0
    %1462 = vmatprep.subr.mxu0 0.0
    %1463 = vmatpush1.msra.mxu0 0.0
    %1464 = vmatprep.subr.mxu0 0.0
    %1465 = vmatpush1.msra.mxu0 0.0
    %1466 = vmatprep.subr.mxu0 0.0
    %1467 = vmatpush1.msra.mxu0 0.0
    %1468 = vmatprep.subr.mxu0 0.0
    %1469 = vmatpush1.msra.mxu0 0.0
    %1470 = vmatprep.subr.mxu0 0.0
    %1471 = vmatpush1.msra.mxu0 0.0
    %1472 = vmatprep.subr.mxu0 0.0
    %1473 = vmatpush1.msra.mxu0 0.0
    %1474 = vmatprep.subr.mxu0 0.0
    %1475 = vmatpush1.msra.mxu0 0.0
    %1476 = vmatprep.subr.mxu0 0.0
    %1477 = vmatpush1.msra.mxu0 0.0
    %1478 = vmatprep.subr.mxu0 0.0
    %1479 = vmatpush1.msra.mxu0 0.0
    %1480 = vmatprep.subr.mxu0 0.0
    %1481 = vmatpush1.msra.mxu0 0.0
    %1482 = vmatprep.subr.mxu0 0.0
    %1483 = vmatpush1.msra.mxu0 0.0
    %1484 = vmatprep.subr.mxu0 0.0
    %1485 = vmatpush1.msra.mxu0 0.0
    %1486 = vmatprep.subr.mxu0 0.0
    %1487 = vmatpush1.msra.mxu0 0.0
    %1488 = vmatprep.subr.mxu0 0.0
    %1489 = vmatpush1.msra.mxu0 0.0
    %1490 = vmatprep.subr.mxu0 0.0
    %1491 = vmatpush1.msra.mxu0 0.0
    %1492 = vmatprep.subr.mxu0 0.0
    %1493 = vmatpush1.msra.mxu0 0.0
    %1494 = vmatprep.subr.mxu0 0.0
    %1495 = vmatpush1.msra.mxu0 0.0
    %1496 = vmatprep.subr.mxu0 0.0
    %1497 = vmatpush1.msra.mxu0 0.0
    %1498 = vmatprep.subr.mxu0 0.0
    %1499 = vmatpush1.msra.mxu0 0.0
    %1500 = vmatprep.mubr.f32.mxu0 0.0
    %1501 = vmatmul.mubr.f32.gmra.mrb[0].mxu0 %v170
    %v1502 = vpop.f32.mrb[0].mxu0
    %v1503 = vadd.f32 0.0, %v1502
    %v1504 = vpop.f32.mrb[0].mxu0
    %1505 = vdwg.mxu0
    %v1506 = vadd.f32 %v1428, %v1503
    %v1507 = vxor.u32 %v1506, 2147483648
    %v1508 = vmul.f32 %v1507, 1.442695
    %v1509 = vpow.pop %v1508
    %v1510 = vadd.f32 %v1509, 1.0
    %v1511 = vrcp.pop %v1510
    %v1512 = vmul.f32 1.0, %v1511
    %v1513 = vtanh.pop %v1506
    %v1514 = vmul.f32 %v1512, 0.0
    %1516 = vrot.lane.b32.xlu0 %v1513, 64
    %v1517 = vpop.permute.xlu0 %1516
    %v1519 = vmul.f32 %v1512, %v1517
    %1521 = vrot.lane.b32.xlu0 %v1519, 32
    %v1522 = vpop.permute.xlu0 %1521
    %v1524 = vadd.f32 %v1514, %v1522
    %v1525 = vtanh.pop %v1524
    %1527 = vrot.lane.b32.xlu0 %v1525, 64
    %v1528 = vpop.permute.xlu0 %1527
    %v1530 = vmul.f32 %v1512, %v1528
    %1532 = vrot.lane.b32.xlu0 %v1530, 32
    %v1533 = vpop.permute.xlu0 %1532
    %v1534 = vsel %vm168, %v1533, 0
    %1536 = vmatprep.subr.mxu0 0.0
    %1537 = vmatpush1.msra.mxu0 %v1342
    %1538 = vmatprep.subr.mxu0 0.0
    %1539 = vmatpush1.msra.mxu0 %v1343
    %1540 = vmatprep.subr.mxu0 0.0
    %1541 = vmatpush1.msra.mxu0 %v1344
    %1542 = vmatprep.subr.mxu0 0.0
    %1543 = vmatpush1.msra.mxu0 %v1345
    %1544 = vmatprep.subr.mxu0 0.0
    %1545 = vmatpush1.msra.mxu0 0.0
    %1546 = vmatprep.subr.mxu0 0.0
    %1547 = vmatpush1.msra.mxu0 0.0
    %1548 = vmatprep.subr.mxu0 0.0
    %1549 = vmatpush1.msra.mxu0 0.0
    %1550 = vmatprep.subr.mxu0 0.0
    %1551 = vmatpush1.msra.mxu0 0.0
    %1552 = vmatprep.subr.mxu0 0.0
    %1553 = vmatpush1.msra.mxu0 0.0
    %1554 = vmatprep.subr.mxu0 0.0
    %1555 = vmatpush1.msra.mxu0 0.0
    %1556 = vmatprep.subr.mxu0 0.0
    %1557 = vmatpush1.msra.mxu0 0.0
    %1558 = vmatprep.subr.mxu0 0.0
    %1559 = vmatpush1.msra.mxu0 0.0
    %1560 = vmatprep.subr.mxu0 0.0
    %1561 = vmatpush1.msra.mxu0 0.0
    %1562 = vmatprep.subr.mxu0 0.0
    %1563 = vmatpush1.msra.mxu0 0.0
    %1564 = vmatprep.subr.mxu0 0.0
    %1565 = vmatpush1.msra.mxu0 0.0
    %1566 = vmatprep.subr.mxu0 0.0
    %1567 = vmatpush1.msra.mxu0 0.0
    %1568 = vmatprep.subr.mxu0 0.0
    %1569 = vmatpush1.msra.mxu0 0.0
    %1570 = vmatprep.subr.mxu0 0.0
    %1571 = vmatpush1.msra.mxu0 0.0
    %1572 = vmatprep.subr.mxu0 0.0
    %1573 = vmatpush1.msra.mxu0 0.0
    %1574 = vmatprep.subr.mxu0 0.0
    %1575 = vmatpush1.msra.mxu0 0.0
    %1576 = vmatprep.subr.mxu0 0.0
    %1577 = vmatpush1.msra.mxu0 0.0
    %1578 = vmatprep.subr.mxu0 0.0
    %1579 = vmatpush1.msra.mxu0 0.0
    %1580 = vmatprep.subr.mxu0 0.0
    %1581 = vmatpush1.msra.mxu0 0.0
    %1582 = vmatprep.subr.mxu0 0.0
    %1583 = vmatpush1.msra.mxu0 0.0
    %1584 = vmatprep.subr.mxu0 0.0
    %1585 = vmatpush1.msra.mxu0 0.0
    %1586 = vmatprep.subr.mxu0 0.0
    %1587 = vmatpush1.msra.mxu0 0.0
    %1588 = vmatprep.subr.mxu0 0.0
    %1589 = vmatpush1.msra.mxu0 0.0
    %1590 = vmatprep.subr.mxu0 0.0
    %1591 = vmatpush1.msra.mxu0 0.0
    %1592 = vmatprep.subr.mxu0 0.0
    %1593 = vmatpush1.msra.mxu0 0.0
    %1594 = vmatprep.subr.mxu0 0.0
    %1595 = vmatpush1.msra.mxu0 0.0
    %1596 = vmatprep.subr.mxu0 0.0
    %1597 = vmatpush1.msra.mxu0 0.0
    %1598 = vmatprep.subr.mxu0 0.0
    %1599 = vmatpush1.msra.mxu0 0.0
    %1600 = vmatprep.mubr.f32.mxu0 0.0
    %1601 = vmatmul.mubr.f32.gmra.mrb[0].mxu0 %v1534
    %v1602 = vpop.f32.mrb[0].mxu0
    %v1603 = vadd.f32 0.0, %v1602
    %v1604 = vpop.f32.mrb[0].mxu0
    %1605 = vdwg.mxu0
    %v1607 = vrot.slane %v1603, 6
    %v1609 = vadd.f32 %v1428, %v1607
    %v1610 = vxor.u32 %v1609, 2147483648
    %v1611 = vmul.f32 %v1610, 1.442695
    %v1612 = vpow.pop %v1611
    %v1613 = vadd.f32 %v1612, 1.0
    %v1614 = vrcp.pop %v1613
    %v1615 = vmul.f32 1.0, %v1614
    %v1616 = vtanh.pop %v1609
    %v1618 = vrot.slane %v1524, 6
    %v1620 = vmul.f32 %v1615, %v1618
    %1622 = vrot.lane.b32.xlu0 %v1616, 64
    %v1623 = vpop.permute.xlu0 %1622
    %v1625 = vmul.f32 %v1615, %v1623
    %1627 = vrot.lane.b32.xlu0 %v1625, 32
    %v1628 = vpop.permute.xlu0 %1627
    %v1630 = vadd.f32 %v1620, %v1628
    %v1631 = vtanh.pop %v1630
    %1633 = vrot.lane.b32.xlu0 %v1631, 64
    %v1634 = vpop.permute.xlu0 %1633
    %v1636 = vmul.f32 %v1615, %v1634
    %v1638 = vrot.slane %v1636, 2
    %1639 = vrot.lane.b32.xlu0 %v1638, 32
    %v1640 = vpop.permute.xlu0 %1639
    %v1641 = vsel %vm168, %v1640, 0
    %1643 = vmatprep.subr.mxu0 0.0
    %1644 = vmatpush1.msra.mxu0 %v1342
    %1645 = vmatprep.subr.mxu0 0.0
    %1646 = vmatpush1.msra.mxu0 %v1343
    %1647 = vmatprep.subr.mxu0 0.0
    %1648 = vmatpush1.msra.mxu0 %v1344
    %1649 = vmatprep.subr.mxu0 0.0
    %1650 = vmatpush1.msra.mxu0 %v1345
    %1651 = vmatprep.subr.mxu0 0.0
    %1652 = vmatpush1.msra.mxu0 0.0
    %1653 = vmatprep.subr.mxu0 0.0
    %1654 = vmatpush1.msra.mxu0 0.0
    %1655 = vmatprep.subr.mxu0 0.0
    %1656 = vmatpush1.msra.mxu0 0.0
    %1657 = vmatprep.subr.mxu0 0.0
    %1658 = vmatpush1.msra.mxu0 0.0
    %1659 = vmatprep.subr.mxu0 0.0
    %1660 = vmatpush1.msra.mxu0 0.0
    %1661 = vmatprep.subr.mxu0 0.0
    %1662 = vmatpush1.msra.mxu0 0.0
    %1663 = vmatprep.subr.mxu0 0.0
    %1664 = vmatpush1.msra.mxu0 0.0
    %1665 = vmatprep.subr.mxu0 0.0
    %1666 = vmatpush1.msra.mxu0 0.0
    %1667 = vmatprep.subr.mxu0 0.0
    %1668 = vmatpush1.msra.mxu0 0.0
    %1669 = vmatprep.subr.mxu0 0.0
    %1670 = vmatpush1.msra.mxu0 0.0
    %1671 = vmatprep.subr.mxu0 0.0
    %1672 = vmatpush1.msra.mxu0 0.0
    %1673 = vmatprep.subr.mxu0 0.0
    %1674 = vmatpush1.msra.mxu0 0.0
    %1675 = vmatprep.subr.mxu0 0.0
    %1676 = vmatpush1.msra.mxu0 0.0
    %1677 = vmatprep.subr.mxu0 0.0
    %1678 = vmatpush1.msra.mxu0 0.0
    %1679 = vmatprep.subr.mxu0 0.0
    %1680 = vmatpush1.msra.mxu0 0.0
    %1681 = vmatprep.subr.mxu0 0.0
    %1682 = vmatpush1.msra.mxu0 0.0
    %1683 = vmatprep.subr.mxu0 0.0
    %1684 = vmatpush1.msra.mxu0 0.0
    %1685 = vmatprep.subr.mxu0 0.0
    %1686 = vmatpush1.msra.mxu0 0.0
    %1687 = vmatprep.subr.mxu0 0.0
    %1688 = vmatpush1.msra.mxu0 0.0
    %1689 = vmatprep.subr.mxu0 0.0
    %1690 = vmatpush1.msra.mxu0 0.0
    %1691 = vmatprep.subr.mxu0 0.0
    %1692 = vmatpush1.msra.mxu0 0.0
    %1693 = vmatprep.subr.mxu0 0.0
    %1694 = vmatpush1.msra.mxu0 0.0
    %1695 = vmatprep.subr.mxu0 0.0
    %1696 = vmatpush1.msra.mxu0 0.0
    %1697 = vmatprep.subr.mxu0 0.0
    %1698 = vmatpush1.msra.mxu0 0.0
    %1699 = vmatprep.subr.mxu0 0.0
    %1700 = vmatpush1.msra.mxu0 0.0
    %1701 = vmatprep.subr.mxu0 0.0
    %1702 = vmatpush1.msra.mxu0 0.0
    %1703 = vmatprep.subr.mxu0 0.0
    %1704 = vmatpush1.msra.mxu0 0.0
    %1705 = vmatprep.subr.mxu0 0.0
    %1706 = vmatpush1.msra.mxu0 0.0
    %1707 = vmatprep.mubr.f32.mxu0 0.0
    %1708 = vmatmul.mubr.f32.gmra.mrb[0].mxu0 %v1641
    %v1709 = vpop.f32.mrb[0].mxu0
    %v1710 = vadd.f32 0.0, %v1709
    %v1711 = vpop.f32.mrb[0].mxu0
    %1712 = vdwg.mxu0
    %v1714 = vrot.slane %v1710, 4
    %v1716 = vadd.f32 %v1428, %v1714
    %v1717 = vxor.u32 %v1716, 2147483648
    %v1718 = vmul.f32 %v1717, 1.442695
    %v1719 = vpow.pop %v1718
    %v1720 = vadd.f32 %v1719, 1.0
    %v1721 = vrcp.pop %v1720
    %v1722 = vmul.f32 1.0, %v1721
    %v1723 = vtanh.pop %v1716
    %v1725 = vrot.slane %v1630, 6
    %v1727 = vmul.f32 %v1722, %v1725
    %1729 = vrot.lane.b32.xlu0 %v1723, 64
    %v1730 = vpop.permute.xlu0 %1729
    %v1732 = vmul.f32 %v1722, %v1730
    %1734 = vrot.lane.b32.xlu0 %v1732, 32
    %v1735 = vpop.permute.xlu0 %1734
    %v1737 = vadd.f32 %v1727, %v1735
    %v1738 = vtanh.pop %v1737
    %1740 = vrot.lane.b32.xlu0 %v1738, 64
    %v1741 = vpop.permute.xlu0 %1740
    %v1743 = vmul.f32 %v1722, %v1741
    %v1745 = vrot.slane %v1743, 4
    %1746 = vrot.lane.b32.xlu0 %v1745, 32
    %v1747 = vpop.permute.xlu0 %1746
    %v1748 = vsel %vm168, %v1747, 0
    %1750 = vmatprep.subr.mxu0 0.0
    %1751 = vmatpush1.msra.mxu0 %v1342
    %1752 = vmatprep.subr.mxu0 0.0
    %1753 = vmatpush1.msra.mxu0 %v1343
    %1754 = vmatprep.subr.mxu0 0.0
    %1755 = vmatpush1.msra.mxu0 %v1344
    %1756 = vmatprep.subr.mxu0 0.0
    %1757 = vmatpush1.msra.mxu0 %v1345
    %1758 = vmatprep.subr.mxu0 0.0
    %1759 = vmatpush1.msra.mxu0 0.0
    %1760 = vmatprep.subr.mxu0 0.0
    %1761 = vmatpush1.msra.mxu0 0.0
    %1762 = vmatprep.subr.mxu0 0.0
    %1763 = vmatpush1.msra.mxu0 0.0
    %1764 = vmatprep.subr.mxu0 0.0
    %1765 = vmatpush1.msra.mxu0 0.0
    %1766 = vmatprep.subr.mxu0 0.0
    %1767 = vmatpush1.msra.mxu0 0.0
    %1768 = vmatprep.subr.mxu0 0.0
    %1769 = vmatpush1.msra.mxu0 0.0
    %1770 = vmatprep.subr.mxu0 0.0
    %1771 = vmatpush1.msra.mxu0 0.0
    %1772 = vmatprep.subr.mxu0 0.0
    %1773 = vmatpush1.msra.mxu0 0.0
    %1774 = vmatprep.subr.mxu0 0.0
    %1775 = vmatpush1.msra.mxu0 0.0
    %1776 = vmatprep.subr.mxu0 0.0
    %1777 = vmatpush1.msra.mxu0 0.0
    %1778 = vmatprep.subr.mxu0 0.0
    %1779 = vmatpush1.msra.mxu0 0.0
    %1780 = vmatprep.subr.mxu0 0.0
    %1781 = vmatpush1.msra.mxu0 0.0
    %1782 = vmatprep.subr.mxu0 0.0
    %1783 = vmatpush1.msra.mxu0 0.0
    %1784 = vmatprep.subr.mxu0 0.0
    %1785 = vmatpush1.msra.mxu0 0.0
    %1786 = vmatprep.subr.mxu0 0.0
    %1787 = vmatpush1.msra.mxu0 0.0
    %1788 = vmatprep.subr.mxu0 0.0
    %1789 = vmatpush1.msra.mxu0 0.0
    %1790 = vmatprep.subr.mxu0 0.0
    %1791 = vmatpush1.msra.mxu0 0.0
    %1792 = vmatprep.subr.mxu0 0.0
    %1793 = vmatpush1.msra.mxu0 0.0
    %1794 = vmatprep.subr.mxu0 0.0
    %1795 = vmatpush1.msra.mxu0 0.0
    %1796 = vmatprep.subr.mxu0 0.0
    %1797 = vmatpush1.msra.mxu0 0.0
    %1798 = vmatprep.subr.mxu0 0.0
    %1799 = vmatpush1.msra.mxu0 0.0
    %1800 = vmatprep.subr.mxu0 0.0
    %1801 = vmatpush1.msra.mxu0 0.0
    %1802 = vmatprep.subr.mxu0 0.0
    %1803 = vmatpush1.msra.mxu0 0.0
    %1804 = vmatprep.subr.mxu0 0.0
    %1805 = vmatpush1.msra.mxu0 0.0
    %1806 = vmatprep.subr.mxu0 0.0
    %1807 = vmatpush1.msra.mxu0 0.0
    %1808 = vmatprep.subr.mxu0 0.0
    %1809 = vmatpush1.msra.mxu0 0.0
    %1810 = vmatprep.subr.mxu0 0.0
    %1811 = vmatpush1.msra.mxu0 0.0
    %1812 = vmatprep.subr.mxu0 0.0
    %1813 = vmatpush1.msra.mxu0 0.0
    %1814 = vmatprep.mubr.f32.mxu0 0.0
    %1815 = vmatmul.mubr.f32.gmra.mrb[0].mxu0 %v1748
    %v1816 = vpop.f32.mrb[0].mxu0
    %v1817 = vadd.f32 0.0, %v1816
    %v1818 = vpop.f32.mrb[0].mxu0
    %1819 = vdwg.mxu0
    %v1821 = vrot.slane %v1817, 2
    %v1823 = vadd.f32 %v1428, %v1821
    %v1824 = vxor.u32 %v1823, 2147483648
    %v1825 = vmul.f32 %v1824, 1.442695
    %v1826 = vpow.pop %v1825
    %v1827 = vadd.f32 %v1826, 1.0
    %v1828 = vrcp.pop %v1827
    %v1829 = vmul.f32 1.0, %v1828
    %v1830 = vtanh.pop %v1823
    %v1832 = vrot.slane %v1737, 6
    %v1834 = vmul.f32 %v1829, %v1832
    %1836 = vrot.lane.b32.xlu0 %v1830, 64
    %v1837 = vpop.permute.xlu0 %1836
    %v1839 = vmul.f32 %v1829, %v1837
    %1841 = vrot.lane.b32.xlu0 %v1839, 32
    %v1842 = vpop.permute.xlu0 %1841
    %v1844 = vadd.f32 %v1834, %v1842
    %v1845 = vtanh.pop %v1844
    %1847 = vrot.lane.b32.xlu0 %v1845, 64
    %v1848 = vpop.permute.xlu0 %1847
    %v1850 = vmul.f32 %v1829, %v1848
    %v1852 = vrot.slane %v1850, 6
    %1853 = vrot.lane.b32.xlu0 %v1852, 32
    %v1854 = vpop.permute.xlu0 %1853
    %v1855 = vsel %vm168, %v1854, 0
    %1857 = vmatprep.subr.mxu0 0.0
    %1858 = vmatpush1.msra.mxu0 %v1342
    %1859 = vmatprep.subr.mxu0 0.0
    %1860 = vmatpush1.msra.mxu0 %v1343
    %1861 = vmatprep.subr.mxu0 0.0
    %1862 = vmatpush1.msra.mxu0 %v1344
    %1863 = vmatprep.subr.mxu0 0.0
    %1864 = vmatpush1.msra.mxu0 %v1345
    %1865 = vmatprep.subr.mxu0 0.0
    %1866 = vmatpush1.msra.mxu0 0.0
    %1867 = vmatprep.subr.mxu0 0.0
    %1868 = vmatpush1.msra.mxu0 0.0
    %1869 = vmatprep.subr.mxu0 0.0
    %1870 = vmatpush1.msra.mxu0 0.0
    %1871 = vmatprep.subr.mxu0 0.0
    %1872 = vmatpush1.msra.mxu0 0.0
    %1873 = vmatprep.subr.mxu0 0.0
    %1874 = vmatpush1.msra.mxu0 0.0
    %1875 = vmatprep.subr.mxu0 0.0
    %1876 = vmatpush1.msra.mxu0 0.0
    %1877 = vmatprep.subr.mxu0 0.0
    %1878 = vmatpush1.msra.mxu0 0.0
    %1879 = vmatprep.subr.mxu0 0.0
    %1880 = vmatpush1.msra.mxu0 0.0
    %1881 = vmatprep.subr.mxu0 0.0
    %1882 = vmatpush1.msra.mxu0 0.0
    %1883 = vmatprep.subr.mxu0 0.0
    %1884 = vmatpush1.msra.mxu0 0.0
    %1885 = vmatprep.subr.mxu0 0.0
    %1886 = vmatpush1.msra.mxu0 0.0
    %1887 = vmatprep.subr.mxu0 0.0
    %1888 = vmatpush1.msra.mxu0 0.0
    %1889 = vmatprep.subr.mxu0 0.0
    %1890 = vmatpush1.msra.mxu0 0.0
    %1891 = vmatprep.subr.mxu0 0.0
    %1892 = vmatpush1.msra.mxu0 0.0
    %1893 = vmatprep.subr.mxu0 0.0
    %1894 = vmatpush1.msra.mxu0 0.0
    %1895 = vmatprep.subr.mxu0 0.0
    %1896 = vmatpush1.msra.mxu0 0.0
    %1897 = vmatprep.subr.mxu0 0.0
    %1898 = vmatpush1.msra.mxu0 0.0
    %1899 = vmatprep.subr.mxu0 0.0
    %1900 = vmatpush1.msra.mxu0 0.0
    %1901 = vmatprep.subr.mxu0 0.0
    %1902 = vmatpush1.msra.mxu0 0.0
    %1903 = vmatprep.subr.mxu0 0.0
    %1904 = vmatpush1.msra.mxu0 0.0
    %1905 = vmatprep.subr.mxu0 0.0
    %1906 = vmatpush1.msra.mxu0 0.0
    %1907 = vmatprep.subr.mxu0 0.0
    %1908 = vmatpush1.msra.mxu0 0.0
    %1909 = vmatprep.subr.mxu0 0.0
    %1910 = vmatpush1.msra.mxu0 0.0
    %1911 = vmatprep.subr.mxu0 0.0
    %1912 = vmatpush1.msra.mxu0 0.0
    %1913 = vmatprep.subr.mxu0 0.0
    %1914 = vmatpush1.msra.mxu0 0.0
    %1915 = vmatprep.subr.mxu0 0.0
    %1916 = vmatpush1.msra.mxu0 0.0
    %1917 = vmatprep.subr.mxu0 0.0
    %1918 = vmatpush1.msra.mxu0 0.0
    %1919 = vmatprep.subr.mxu0 0.0
    %1920 = vmatpush1.msra.mxu0 0.0
    %1921 = vmatprep.mubr.f32.mxu0 0.0
    %1922 = vmatmul.mubr.f32.gmra.mrb[0].mxu0 %v1855
    %v1923 = vpop.f32.mrb[0].mxu0
    %v1924 = vadd.f32 0.0, %v1923
    %v1925 = vpop.f32.mrb[0].mxu0
    %1926 = vdwg.mxu0
    %v1927 = vadd.f32 %v1433, %v1924
    %v1928 = vxor.u32 %v1927, 2147483648
    %v1929 = vmul.f32 %v1928, 1.442695
    %v1930 = vpow.pop %v1929
    %v1931 = vadd.f32 %v1930, 1.0
    %v1932 = vrcp.pop %v1931
    %v1933 = vmul.f32 1.0, %v1932
    %v1934 = vtanh.pop %v1927
    %v1936 = vrot.slane %v1844, 6
    %v1938 = vmul.f32 %v1933, %v1936
    %1940 = vrot.lane.b32.xlu0 %v1934, 64
    %v1941 = vpop.permute.xlu0 %1940
    %v1943 = vmul.f32 %v1933, %v1941
    %1945 = vrot.lane.b32.xlu0 %v1943, 32
    %v1946 = vpop.permute.xlu0 %1945
    %v1948 = vadd.f32 %v1938, %v1946
    %v1949 = vtanh.pop %v1948
    %1951 = vrot.lane.b32.xlu0 %v1949, 64
    %v1952 = vpop.permute.xlu0 %1951
    %v1954 = vmul.f32 %v1933, %v1952
    %1956 = vrot.lane.b32.xlu0 %v1954, 32
    %v1957 = vpop.permute.xlu0 %1956
    %v1958 = vsel %vm168, %v1957, 0
    %1960 = vmatprep.subr.mxu0 0.0
    %1961 = vmatpush1.msra.mxu0 %v1342
    %1962 = vmatprep.subr.mxu0 0.0
    %1963 = vmatpush1.msra.mxu0 %v1343
    %1964 = vmatprep.subr.mxu0 0.0
    %1965 = vmatpush1.msra.mxu0 %v1344
    %1966 = vmatprep.subr.mxu0 0.0
    %1967 = vmatpush1.msra.mxu0 %v1345
    %1968 = vmatprep.subr.mxu0 0.0
    %1969 = vmatpush1.msra.mxu0 0.0
    %1970 = vmatprep.subr.mxu0 0.0
    %1971 = vmatpush1.msra.mxu0 0.0
    %1972 = vmatprep.subr.mxu0 0.0
    %1973 = vmatpush1.msra.mxu0 0.0
    %1974 = vmatprep.subr.mxu0 0.0
    %1975 = vmatpush1.msra.mxu0 0.0
    %1976 = vmatprep.subr.mxu0 0.0
    %1977 = vmatpush1.msra.mxu0 0.0
    %1978 = vmatprep.subr.mxu0 0.0
    %1979 = vmatpush1.msra.mxu0 0.0
    %1980 = vmatprep.subr.mxu0 0.0
    %1981 = vmatpush1.msra.mxu0 0.0
    %1982 = vmatprep.subr.mxu0 0.0
    %1983 = vmatpush1.msra.mxu0 0.0
    %1984 = vmatprep.subr.mxu0 0.0
    %1985 = vmatpush1.msra.mxu0 0.0
    %1986 = vmatprep.subr.mxu0 0.0
    %1987 = vmatpush1.msra.mxu0 0.0
    %1988 = vmatprep.subr.mxu0 0.0
    %1989 = vmatpush1.msra.mxu0 0.0
    %1990 = vmatprep.subr.mxu0 0.0
    %1991 = vmatpush1.msra.mxu0 0.0
    %1992 = vmatprep.subr.mxu0 0.0
    %1993 = vmatpush1.msra.mxu0 0.0
    %1994 = vmatprep.subr.mxu0 0.0
    %1995 = vmatpush1.msra.mxu0 0.0
    %1996 = vmatprep.subr.mxu0 0.0
    %1997 = vmatpush1.msra.mxu0 0.0
    %1998 = vmatprep.subr.mxu0 0.0
    %1999 = vmatpush1.msra.mxu0 0.0
    %2000 = vmatprep.subr.mxu0 0.0
    %2001 = vmatpush1.msra.mxu0 0.0
    %2002 = vmatprep.subr.mxu0 0.0
    %2003 = vmatpush1.msra.mxu0 0.0
    %2004 = vmatprep.subr.mxu0 0.0
    %2005 = vmatpush1.msra.mxu0 0.0
    %2006 = vmatprep.subr.mxu0 0.0
    %2007 = vmatpush1.msra.mxu0 0.0
    %2008 = vmatprep.subr.mxu0 0.0
    %2009 = vmatpush1.msra.mxu0 0.0
    %2010 = vmatprep.subr.mxu0 0.0
    %2011 = vmatpush1.msra.mxu0 0.0
    %2012 = vmatprep.subr.mxu0 0.0
    %2013 = vmatpush1.msra.mxu0 0.0
    %2014 = vmatprep.subr.mxu0 0.0
    %2015 = vmatpush1.msra.mxu0 0.0
    %2016 = vmatprep.subr.mxu0 0.0
    %2017 = vmatpush1.msra.mxu0 0.0
    %2018 = vmatprep.subr.mxu0 0.0
    %2019 = vmatpush1.msra.mxu0 0.0
    %2020 = vmatprep.subr.mxu0 0.0
    %2021 = vmatpush1.msra.mxu0 0.0
    %2022 = vmatprep.subr.mxu0 0.0
    %2023 = vmatpush1.msra.mxu0 0.0
    %2024 = vmatprep.mubr.f32.mxu0 0.0
    %2025 = vmatmul.mubr.f32.gmra.mrb[0].mxu0 %v1958
    %v2026 = vpop.f32.mrb[0].mxu0
    %v2027 = vadd.f32 0.0, %v2026
    %v2028 = vpop.f32.mrb[0].mxu0
    %2029 = vdwg.mxu0
    %v2031 = vrot.slane %v2027, 6
    %v2033 = vadd.f32 %v1433, %v2031
    %v2034 = vxor.u32 %v2033, 2147483648
    %v2035 = vmul.f32 %v2034, 1.442695
    %v2036 = vpow.pop %v2035
    %v2037 = vadd.f32 %v2036, 1.0
    %v2038 = vrcp.pop %v2037
    %v2039 = vmul.f32 1.0, %v2038
    %v2040 = vtanh.pop %v2033
    %v2042 = vrot.slane %v1948, 6
    %v2044 = vmul.f32 %v2039, %v2042
    %2046 = vrot.lane.b32.xlu0 %v2040, 64
    %v2047 = vpop.permute.xlu0 %2046
    %v2049 = vmul.f32 %v2039, %v2047
    %2051 = vrot.lane.b32.xlu0 %v2049, 32
    %v2052 = vpop.permute.xlu0 %2051
    %v2054 = vadd.f32 %v2044, %v2052
    %v2055 = vtanh.pop %v2054
    %2057 = vrot.lane.b32.xlu0 %v2055, 64
    %v2058 = vpop.permute.xlu0 %2057
    %v2060 = vmul.f32 %v2039, %v2058
    %v2062 = vrot.slane %v2060, 2
    %2063 = vrot.lane.b32.xlu0 %v2062, 32
    %v2064 = vpop.permute.xlu0 %2063
    %v2065 = vsel %vm168, %v2064, 0
    %2067 = vmatprep.subr.mxu0 0.0
    %2068 = vmatpush1.msra.mxu0 %v1342
    %2069 = vmatprep.subr.mxu0 0.0
    %2070 = vmatpush1.msra.mxu0 %v1343
    %2071 = vmatprep.subr.mxu0 0.0
    %2072 = vmatpush1.msra.mxu0 %v1344
    %2073 = vmatprep.subr.mxu0 0.0
    %2074 = vmatpush1.msra.mxu0 %v1345
    %2075 = vmatprep.subr.mxu0 0.0
    %2076 = vmatpush1.msra.mxu0 0.0
    %2077 = vmatprep.subr.mxu0 0.0
    %2078 = vmatpush1.msra.mxu0 0.0
    %2079 = vmatprep.subr.mxu0 0.0
    %2080 = vmatpush1.msra.mxu0 0.0
    %2081 = vmatprep.subr.mxu0 0.0
    %2082 = vmatpush1.msra.mxu0 0.0
    %2083 = vmatprep.subr.mxu0 0.0
    %2084 = vmatpush1.msra.mxu0 0.0
    %2085 = vmatprep.subr.mxu0 0.0
    %2086 = vmatpush1.msra.mxu0 0.0
    %2087 = vmatprep.subr.mxu0 0.0
    %2088 = vmatpush1.msra.mxu0 0.0
    %2089 = vmatprep.subr.mxu0 0.0
    %2090 = vmatpush1.msra.mxu0 0.0
    %2091 = vmatprep.subr.mxu0 0.0
    %2092 = vmatpush1.msra.mxu0 0.0
    %2093 = vmatprep.subr.mxu0 0.0
    %2094 = vmatpush1.msra.mxu0 0.0
    %2095 = vmatprep.subr.mxu0 0.0
    %2096 = vmatpush1.msra.mxu0 0.0
    %2097 = vmatprep.subr.mxu0 0.0
    %2098 = vmatpush1.msra.mxu0 0.0
    %2099 = vmatprep.subr.mxu0 0.0
    %2100 = vmatpush1.msra.mxu0 0.0
    %2101 = vmatprep.subr.mxu0 0.0
    %2102 = vmatpush1.msra.mxu0 0.0
    %2103 = vmatprep.subr.mxu0 0.0
    %2104 = vmatpush1.msra.mxu0 0.0
    %2105 = vmatprep.subr.mxu0 0.0
    %2106 = vmatpush1.msra.mxu0 0.0
    %2107 = vmatprep.subr.mxu0 0.0
    %2108 = vmatpush1.msra.mxu0 0.0
    %2109 = vmatprep.subr.mxu0 0.0
    %2110 = vmatpush1.msra.mxu0 0.0
    %2111 = vmatprep.subr.mxu0 0.0
    %2112 = vmatpush1.msra.mxu0 0.0
    %2113 = vmatprep.subr.mxu0 0.0
    %2114 = vmatpush1.msra.mxu0 0.0
    %2115 = vmatprep.subr.mxu0 0.0
    %2116 = vmatpush1.msra.mxu0 0.0
    %2117 = vmatprep.subr.mxu0 0.0
    %2118 = vmatpush1.msra.mxu0 0.0
    %2119 = vmatprep.subr.mxu0 0.0
    %2120 = vmatpush1.msra.mxu0 0.0
    %2121 = vmatprep.subr.mxu0 0.0
    %2122 = vmatpush1.msra.mxu0 0.0
    %2123 = vmatprep.subr.mxu0 0.0
    %2124 = vmatpush1.msra.mxu0 0.0
    %2125 = vmatprep.subr.mxu0 0.0
    %2126 = vmatpush1.msra.mxu0 0.0
    %2127 = vmatprep.subr.mxu0 0.0
    %2128 = vmatpush1.msra.mxu0 0.0
    %2129 = vmatprep.subr.mxu0 0.0
    %2130 = vmatpush1.msra.mxu0 0.0
    %2131 = vmatprep.mubr.f32.mxu0 0.0
    %2132 = vmatmul.mubr.f32.gmra.mrb[0].mxu0 %v2065
    %v2133 = vpop.f32.mrb[0].mxu0
    %v2134 = vadd.f32 0.0, %v2133
    %v2135 = vpop.f32.mrb[0].mxu0
    %2136 = vdwg.mxu0
    %v2138 = vrot.slane %v2134, 4
    %v2140 = vadd.f32 %v1433, %v2138
    %v2141 = vxor.u32 %v2140, 2147483648
    %v2142 = vmul.f32 %v2141, 1.442695
    %v2143 = vpow.pop %v2142
    %v2144 = vadd.f32 %v2143, 1.0
    %v2145 = vrcp.pop %v2144
    %v2146 = vmul.f32 1.0, %v2145
    %v2147 = vtanh.pop %v2140
    %v2149 = vrot.slane %v2054, 6
    %v2151 = vmul.f32 %v2146, %v2149
    %2153 = vrot.lane.b32.xlu0 %v2147, 64
    %v2154 = vpop.permute.xlu0 %2153
    %v2156 = vmul.f32 %v2146, %v2154
    %2158 = vrot.lane.b32.xlu0 %v2156, 32
    %v2159 = vpop.permute.xlu0 %2158
    %v2161 = vadd.f32 %v2151, %v2159
    %v2162 = vtanh.pop %v2161
    %2164 = vrot.lane.b32.xlu0 %v2162, 64
    %v2165 = vpop.permute.xlu0 %2164
    %v2167 = vmul.f32 %v2146, %v2165
    %v2169 = vrot.slane %v2167, 4
    %2170 = vrot.lane.b32.xlu0 %v2169, 32
    %v2171 = vpop.permute.xlu0 %2170
    %v2172 = vsel %vm168, %v2171, 0
    %2174 = vmatprep.subr.mxu0 0.0
    %2175 = vmatpush1.msra.mxu0 %v1342
    %2176 = vmatprep.subr.mxu0 0.0
    %2177 = vmatpush1.msra.mxu0 %v1343
    %2178 = vmatprep.subr.mxu0 0.0
    %2179 = vmatpush1.msra.mxu0 %v1344
    %2180 = vmatprep.subr.mxu0 0.0
    %2181 = vmatpush1.msra.mxu0 %v1345
    %2182 = vmatprep.subr.mxu0 0.0
    %2183 = vmatpush1.msra.mxu0 0.0
    %2184 = vmatprep.subr.mxu0 0.0
    %2185 = vmatpush1.msra.mxu0 0.0
    %2186 = vmatprep.subr.mxu0 0.0
    %2187 = vmatpush1.msra.mxu0 0.0
    %2188 = vmatprep.subr.mxu0 0.0
    %2189 = vmatpush1.msra.mxu0 0.0
    %2190 = vmatprep.subr.mxu0 0.0
    %2191 = vmatpush1.msra.mxu0 0.0
    %2192 = vmatprep.subr.mxu0 0.0
    %2193 = vmatpush1.msra.mxu0 0.0
    %2194 = vmatprep.subr.mxu0 0.0
    %2195 = vmatpush1.msra.mxu0 0.0
    %2196 = vmatprep.subr.mxu0 0.0
    %2197 = vmatpush1.msra.mxu0 0.0
    %2198 = vmatprep.subr.mxu0 0.0
    %2199 = vmatpush1.msra.mxu0 0.0
    %2200 = vmatprep.subr.mxu0 0.0
    %2201 = vmatpush1.msra.mxu0 0.0
    %2202 = vmatprep.subr.mxu0 0.0
    %2203 = vmatpush1.msra.mxu0 0.0
    %2204 = vmatprep.subr.mxu0 0.0
    %2205 = vmatpush1.msra.mxu0 0.0
    %2206 = vmatprep.subr.mxu0 0.0
    %2207 = vmatpush1.msra.mxu0 0.0
    %2208 = vmatprep.subr.mxu0 0.0
    %2209 = vmatpush1.msra.mxu0 0.0
    %2210 = vmatprep.subr.mxu0 0.0
    %2211 = vmatpush1.msra.mxu0 0.0
    %2212 = vmatprep.subr.mxu0 0.0
    %2213 = vmatpush1.msra.mxu0 0.0
    %2214 = vmatprep.subr.mxu0 0.0
    %2215 = vmatpush1.msra.mxu0 0.0
    %2216 = vmatprep.subr.mxu0 0.0
    %2217 = vmatpush1.msra.mxu0 0.0
    %2218 = vmatprep.subr.mxu0 0.0
    %2219 = vmatpush1.msra.mxu0 0.0
    %2220 = vmatprep.subr.mxu0 0.0
    %2221 = vmatpush1.msra.mxu0 0.0
    %2222 = vmatprep.subr.mxu0 0.0
    %2223 = vmatpush1.msra.mxu0 0.0
    %2224 = vmatprep.subr.mxu0 0.0
    %2225 = vmatpush1.msra.mxu0 0.0
    %2226 = vmatprep.subr.mxu0 0.0
    %2227 = vmatpush1.msra.mxu0 0.0
    %2228 = vmatprep.subr.mxu0 0.0
    %2229 = vmatpush1.msra.mxu0 0.0
    %2230 = vmatprep.subr.mxu0 0.0
    %2231 = vmatpush1.msra.mxu0 0.0
    %2232 = vmatprep.subr.mxu0 0.0
    %2233 = vmatpush1.msra.mxu0 0.0
    %2234 = vmatprep.subr.mxu0 0.0
    %2235 = vmatpush1.msra.mxu0 0.0
    %2236 = vmatprep.subr.mxu0 0.0
    %2237 = vmatpush1.msra.mxu0 0.0
    %2238 = vmatprep.mubr.f32.mxu0 0.0
    %2239 = vmatmul.mubr.f32.gmra.mrb[0].mxu0 %v2172
    %v2240 = vpop.f32.mrb[0].mxu0
    %v2241 = vadd.f32 0.0, %v2240
    %v2242 = vpop.f32.mrb[0].mxu0
    %2243 = vdwg.mxu0
    %v2245 = vrot.slane %v2241, 2
    %v2247 = vadd.f32 %v1433, %v2245
    %v2248 = vxor.u32 %v2247, 2147483648
    %v2249 = vmul.f32 %v2248, 1.442695
    %v2250 = vpow.pop %v2249
    %v2251 = vadd.f32 %v2250, 1.0
    %v2252 = vrcp.pop %v2251
    %v2253 = vmul.f32 1.0, %v2252
    %v2254 = vtanh.pop %v2247
    %v2256 = vrot.slane %v2161, 6
    %v2258 = vmul.f32 %v2253, %v2256
    %2260 = vrot.lane.b32.xlu0 %v2254, 64
    %v2261 = vpop.permute.xlu0 %2260
    %v2263 = vmul.f32 %v2253, %v2261
    %2265 = vrot.lane.b32.xlu0 %v2263, 32
    %v2266 = vpop.permute.xlu0 %2265
    %v2268 = vadd.f32 %v2258, %v2266
    %v2269 = vtanh.pop %v2268
    %2271 = vrot.lane.b32.xlu0 %v2269, 64
    %v2272 = vpop.permute.xlu0 %2271
    %v2274 = vmul.f32 %v2253, %v2272
    %v2275 = vld [vmem:[#allocation6] sm:$0xff]
    %v2276 = vld [vmem:[#allocation6 + $0x8] sm:$0xff]
    %v2277 = vld [vmem:[#allocation6 + $0x10] sm:$0xff]
    %v2278 = vld [vmem:[#allocation6 + $0x18] sm:$0xff]
    %v2279 = vld [vmem:[%s8] sm:$0x1]
    %v2281 = vlaneseq
    %v2282 = vshrl.u32 %v2281, 7
    %v2283 = vsub.s32 0, %v2282
    %v2284 = vrot.slane %v2279, %v2283
    %v2287 = vrot.slane %v2274, 6
    %2288 = vrot.lane.b32.xlu0 %v2287, 32
    %v2289 = vpop.permute.xlu0 %2288
    %v2290 = vsel %vm168, %v2289, 0
    %2292 = vmatprep.subr.mxu0 0.0
    %2293 = vmatpush1.msra.mxu0 %v2275
    %2294 = vmatprep.subr.mxu0 0.0
    %2295 = vmatpush1.msra.mxu0 %v2276
    %2296 = vmatprep.subr.mxu0 0.0
    %2297 = vmatpush1.msra.mxu0 %v2277
    %2298 = vmatprep.subr.mxu0 0.0
    %2299 = vmatpush1.msra.mxu0 %v2278
    %2300 = vmatprep.subr.mxu0 0.0
    %2301 = vmatpush1.msra.mxu0 0.0
    %2302 = vmatprep.subr.mxu0 0.0
    %2303 = vmatpush1.msra.mxu0 0.0
    %2304 = vmatprep.subr.mxu0 0.0
    %2305 = vmatpush1.msra.mxu0 0.0
    %2306 = vmatprep.subr.mxu0 0.0
    %2307 = vmatpush1.msra.mxu0 0.0
    %2308 = vmatprep.subr.mxu0 0.0
    %2309 = vmatpush1.msra.mxu0 0.0
    %2310 = vmatprep.subr.mxu0 0.0
    %2311 = vmatpush1.msra.mxu0 0.0
    %2312 = vmatprep.subr.mxu0 0.0
    %2313 = vmatpush1.msra.mxu0 0.0
    %2314 = vmatprep.subr.mxu0 0.0
    %2315 = vmatpush1.msra.mxu0 0.0
    %2316 = vmatprep.subr.mxu0 0.0
    %2317 = vmatpush1.msra.mxu0 0.0
    %2318 = vmatprep.subr.mxu0 0.0
    %2319 = vmatpush1.msra.mxu0 0.0
    %2320 = vmatprep.subr.mxu0 0.0
    %2321 = vmatpush1.msra.mxu0 0.0
    %2322 = vmatprep.subr.mxu0 0.0
    %2323 = vmatpush1.msra.mxu0 0.0
    %2324 = vmatprep.subr.mxu0 0.0
    %2325 = vmatpush1.msra.mxu0 0.0
    %2326 = vmatprep.subr.mxu0 0.0
    %2327 = vmatpush1.msra.mxu0 0.0
    %2328 = vmatprep.subr.mxu0 0.0
    %2329 = vmatpush1.msra.mxu0 0.0
    %2330 = vmatprep.subr.mxu0 0.0
    %2331 = vmatpush1.msra.mxu0 0.0
    %2332 = vmatprep.subr.mxu0 0.0
    %2333 = vmatpush1.msra.mxu0 0.0
    %2334 = vmatprep.subr.mxu0 0.0
    %2335 = vmatpush1.msra.mxu0 0.0
    %2336 = vmatprep.subr.mxu0 0.0
    %2337 = vmatpush1.msra.mxu0 0.0
    %2338 = vmatprep.subr.mxu0 0.0
    %2339 = vmatpush1.msra.mxu0 0.0
    %2340 = vmatprep.subr.mxu0 0.0
    %2341 = vmatpush1.msra.mxu0 0.0
    %2342 = vmatprep.subr.mxu0 0.0
    %2343 = vmatpush1.msra.mxu0 0.0
    %2344 = vmatprep.subr.mxu0 0.0
    %2345 = vmatpush1.msra.mxu0 0.0
    %2346 = vmatprep.subr.mxu0 0.0
    %2347 = vmatpush1.msra.mxu0 0.0
    %2348 = vmatprep.subr.mxu0 0.0
    %2349 = vmatpush1.msra.mxu0 0.0
    %2350 = vmatprep.subr.mxu0 0.0
    %2351 = vmatpush1.msra.mxu0 0.0
    %2352 = vmatprep.subr.mxu0 0.0
    %2353 = vmatpush1.msra.mxu0 0.0
    %2354 = vmatprep.subr.mxu0 0.0
    %2355 = vmatpush1.msra.mxu0 0.0
    %2356 = vmatprep.mubr.f32.mxu0 0.0
    %2357 = vmatmul.mubr.f32.gmra.mrb[0].mxu0 %v2290
    %v2358 = vpop.f32.mrb[0].mxu0
    %v2359 = vadd.f32 %v2284, %v2358
    %v2360 = vpop.f32.mrb[0].mxu0
    %2361 = vdwg.mxu0
    %v2362 = vmax.f32 %v2359, 0.0
    %v2363 = vld [vmem:[%s9] sm:$0xff]
    %v2364 = vld [vmem:[%s9 + $0x8] sm:$0xff]
    %v2365 = vld [vmem:[%s9 + $0x10] sm:$0xff]
    %v2366 = vld [vmem:[%s9 + $0x18] sm:$0xff]
    %v2367 = vld [vmem:[#allocation3] sm:$0x1]
    %v2369 = vlaneseq
    %v2370 = vshrl.u32 %v2369, 7
    %v2371 = vsub.s32 0, %v2370
    %v2372 = vrot.slane %v2367, %v2371
    %v2375 = vsel %vm168, %v2362, 0
    %2377 = vmatprep.subr.mxu0 0.0
    %2378 = vmatpush1.msra.mxu0 %v2363
    %2379 = vmatprep.subr.mxu0 0.0
    %2380 = vmatpush1.msra.mxu0 %v2364
    %2381 = vmatprep.subr.mxu0 0.0
    %2382 = vmatpush1.msra.mxu0 %v2365
    %2383 = vmatprep.subr.mxu0 0.0
    %2384 = vmatpush1.msra.mxu0 %v2366
    %2385 = vmatprep.subr.mxu0 0.0
    %2386 = vmatpush1.msra.mxu0 0.0
    %2387 = vmatprep.subr.mxu0 0.0
    %2388 = vmatpush1.msra.mxu0 0.0
    %2389 = vmatprep.subr.mxu0 0.0
    %2390 = vmatpush1.msra.mxu0 0.0
    %2391 = vmatprep.subr.mxu0 0.0
    %2392 = vmatpush1.msra.mxu0 0.0
    %2393 = vmatprep.subr.mxu0 0.0
    %2394 = vmatpush1.msra.mxu0 0.0
    %2395 = vmatprep.subr.mxu0 0.0
    %2396 = vmatpush1.msra.mxu0 0.0
    %2397 = vmatprep.subr.mxu0 0.0
    %2398 = vmatpush1.msra.mxu0 0.0
    %2399 = vmatprep.subr.mxu0 0.0
    %2400 = vmatpush1.msra.mxu0 0.0
    %2401 = vmatprep.subr.mxu0 0.0
    %2402 = vmatpush1.msra.mxu0 0.0
    %2403 = vmatprep.subr.mxu0 0.0
    %2404 = vmatpush1.msra.mxu0 0.0
    %2405 = vmatprep.subr.mxu0 0.0
    %2406 = vmatpush1.msra.mxu0 0.0
    %2407 = vmatprep.subr.mxu0 0.0
    %2408 = vmatpush1.msra.mxu0 0.0
    %2409 = vmatprep.subr.mxu0 0.0
    %2410 = vmatpush1.msra.mxu0 0.0
    %2411 = vmatprep.subr.mxu0 0.0
    %2412 = vmatpush1.msra.mxu0 0.0
    %2413 = vmatprep.subr.mxu0 0.0
    %2414 = vmatpush1.msra.mxu0 0.0
    %2415 = vmatprep.subr.mxu0 0.0
    %2416 = vmatpush1.msra.mxu0 0.0
    %2417 = vmatprep.subr.mxu0 0.0
    %2418 = vmatpush1.msra.mxu0 0.0
    %2419 = vmatprep.subr.mxu0 0.0
    %2420 = vmatpush1.msra.mxu0 0.0
    %2421 = vmatprep.subr.mxu0 0.0
    %2422 = vmatpush1.msra.mxu0 0.0
    %2423 = vmatprep.subr.mxu0 0.0
    %2424 = vmatpush1.msra.mxu0 0.0
    %2425 = vmatprep.subr.mxu0 0.0
    %2426 = vmatpush1.msra.mxu0 0.0
    %2427 = vmatprep.subr.mxu0 0.0
    %2428 = vmatpush1.msra.mxu0 0.0
    %2429 = vmatprep.subr.mxu0 0.0
    %2430 = vmatpush1.msra.mxu0 0.0
    %2431 = vmatprep.subr.mxu0 0.0
    %2432 = vmatpush1.msra.mxu0 0.0
    %2433 = vmatprep.subr.mxu0 0.0
    %2434 = vmatpush1.msra.mxu0 0.0
    %2435 = vmatprep.subr.mxu0 0.0
    %2436 = vmatpush1.msra.mxu0 0.0
    %2437 = vmatprep.subr.mxu0 0.0
    %2438 = vmatpush1.msra.mxu0 0.0
    %2439 = vmatprep.subr.mxu0 0.0
    %2440 = vmatpush1.msra.mxu0 0.0
    %2441 = vmatprep.mubr.f32.mxu0 0.0
    %2442 = vmatmul.mubr.f32.gmra.mrb[0].mxu0 %v2375
    %v2443 = vpop.f32.mrb[0].mxu0
    %v2444 = vadd.f32 %v2372, %v2443
    %v2445 = vpop.f32.mrb[0].mxu0
    %2446 = vdwg.mxu0
    %vm2447 = vcmask 1024
    %2448 = vst.msk [vmem:[%s11] sm:$0x3] %vm2447, %v2444
    // Predicated region
    $region54: #{stock_model_forward.1} parent=1 // pred_check
      _
    $region55: #{stock_model_forward.1} parent=1 // pred_check_branch
      %2450 = sbr.rel (0) target = $region57
    $region56: #{stock_model_forward.1} parent=1 // pred_region
      _
    $region57: #{stock_model_forward.1} parent=1 // pred_fallthru
      _
    // Predicated region
    $region58: #{stock_model_forward.1} parent=1 // pred_check
      _
    $region59: #{stock_model_forward.1} parent=1 // pred_check_branch
      %2452 = sbr.rel (0) target = $region61
    $region60: #{stock_model_forward.1} parent=1 // pred_region
      _
    $region61: #{stock_model_forward.1} parent=1 // pred_fallthru
      _
    %2453 = vsyncpa [#allocation5], 1
    %2454 = vsyncpa [#allocation7], 1

</llo_original>
